<compile_context>
chip_gen: v6e
topology: v6e:2x2x1
jax: 0.10.0
libtpu: 0.0.40
codegen_flags: <defaults>
</compile_context>

<pallas_src>
import functools

import jax
import jax.numpy as jnp
from jax import lax
from jax.experimental import pallas as pl
from jax.experimental.pallas import tpu as pltpu


def basic_block_kernel(mask_ref, x_ref, w1_ref, b1_ref, w2_ref, b2_ref,
                       out_ref, taps_ref, *, H, W, tap_is_bf16):
    """One fused BasicBlock step on a (C, Lb) activation block.

    mask_ref: (1, Lb) int32  bit-encoded image-edge validity masks (hoisted)
    x_ref:    (C, Lb) f32    activations, lane-dense (Lb = nb*H*W)
    w*_ref:   (C, 9C) bf16   conv weights, BN scale folded, taps (ky,kx) major
    b*_ref:   (C, 1)  f32    folded BN bias
    out_ref:  (C, Lb) f32
    taps_ref: (9C, Lb)       shared im2col scratch (reused by conv1 & conv2)
    """
    C, L = x_ref.shape

    # Hoisted edge masks: bit0 h>=1, bit1 h<=H-2, bit2 w>=1, bit3 w<=W-2.
    m = mask_ref[...]
    row_ok = {-1: (m & 1) != 0, 1: (m & 2) != 0}
    col_ok = {-1: (m & 4) != 0, 1: (m & 8) != 0}

    x = x_ref[...]                                           # (C, L) f32
    tap_store_dtype = jnp.bfloat16 if tap_is_bf16 else jnp.float32

    def build_taps(feat):
        # im2col: lane rolls (XLU) + edge-mask select, written directly into
        # the shared VMEM scratch (cast at the store, no concat pass).
        for k in range(9):
            dy, dx = k // 3 - 1, k % 3 - 1
            off = dy * W + dx
            if off == 0:
                shifted = feat
            else:
                # shifted[p] = feat[p + off]; wrap-around positions are exactly
                # the out-of-image taps, zeroed by the mask (== zero padding).
                shifted = pltpu.roll(feat, shift=(-off) % L, axis=1)
            msk = None
            if dy != 0:
                msk = row_ok[dy]
            if dx != 0:
                msk = col_ok[dx] if msk is None else (msk & col_ok[dx])
            if msk is not None:
                shifted = jnp.where(msk, shifted, 0.0)
            taps_ref[pl.ds(k * C, C), :] = shifted.astype(tap_store_dtype)

    def conv(w_ref):
        taps = taps_ref[...]
        if not tap_is_bf16:
            taps = taps.astype(jnp.bfloat16)
        return jnp.dot(w_ref[...], taps, preferred_element_type=jnp.float32)

    # conv1 (BN scale folded) -> bias -> relu
    build_taps(x)
    y1 = jnp.maximum(conv(w1_ref) + b1_ref[...], 0.0)

    # conv2 (BN scale folded) -> bias -> +identity -> relu  (scratch reused)
    build_taps(y1)
    out_ref[...] = jnp.maximum(conv(w2_ref) + b2_ref[...] + x, 0.0)


def basic_block_pallas(x_nchw, w1_hwio, w2_hwio, bn1, bn2, eps=1e-5,
                       vmem_budget_bytes=16 << 20):
    """x_nchw: (N, C, H, W) f32 (PyTorch layout); w*_hwio: (3, 3, C, C);
    bn* = (gamma, beta, running_mean, running_var). Returns NCHW output."""
    N, C, H, W = x_nchw.shape
    assert w1_hwio.shape == (3, 3, C, C) and w2_hwio.shape == (3, 3, C, C)
    assert C % 8 == 0, "channel (sublane) dim must be a multiple of 8"
    HW = H * W
    L = N * HW

    # bf16 tap scratch when the per-tap sublane offset k*C is 16-aligned
    # (bf16 sublane packing); otherwise fall back to an f32 scratch (still
    # shared between both convs) and cast to bf16 at the matmul.
    tap_is_bf16 = (C % 16 == 0)
    tap_dtype = jnp.bfloat16 if tap_is_bf16 else jnp.float32
    tap_bytes = 2 if tap_is_bf16 else 4

    def fold(w_hwio, bn):
        g, b, m, v = bn
        s = g / jnp.sqrt(v + eps)                            # per out-channel
        w_mat = jnp.transpose(w_hwio * s, (3, 0, 1, 2)).reshape(C, 9 * C)
        return (w_mat.astype(jnp.bfloat16),
                (b - m * s).reshape(C, 1).astype(jnp.float32))

    w1_mat, b1 = fold(w1_hwio, bn1)
    w2_mat, b2 = fold(w2_hwio, bn2)

    # Channels-major, batch+spatial flattened: (C, N*H*W); lane dim is dense.
    x_flat = jnp.transpose(x_nchw, (1, 0, 2, 3)).reshape(C, L)

    # Hoisted image-edge masks, bit-encoded once in the wrapper (avoids
    # per-step iota + div/mod-by-W over the whole block inside the kernel).
    pos = jnp.arange(L, dtype=jnp.int32)
    h_pos = (pos // W) % H
    w_pos = pos % W
    mask_bits = ((h_pos >= 1).astype(jnp.int32)
                 | ((h_pos <= H - 2).astype(jnp.int32) << 1)
                 | ((w_pos >= 1).astype(jnp.int32) << 2)
                 | ((w_pos <= W - 2).astype(jnp.int32) << 3)).reshape(1, L)

    # ---- full per-step VMEM working-set estimate (nb images per step) ----
    def step_bytes(nb):
        Lb = nb * HW
        io = 2 * 2 * C * Lb * 4                # x + out blocks, double-buffered
        msk = 2 * Lb * 4                       # mask block, double-buffered
        wts = 2 * 2 * (C * 9 * C * 2 + C * 4)  # resident weights + biases
        taps = 9 * C * Lb * tap_bytes          # shared im2col scratch
        live = 3 * C * Lb * 4                  # x / y1 / y2 f32 values live
        return io + msk + wts + taps + live

    # Largest divisor of N that fits the budget; prefer 128-aligned lane width
    # (unmasked vst) and keep >= 2 grid steps so v7x megacore can shard them.
    divisors = [d for d in range(1, N + 1) if N % d == 0]
    fitting = [d for d in divisors if step_bytes(d) <= vmem_budget_bytes] or [1]
    aligned = [d for d in fitting if (d * HW) % 128 == 0]
    pool = aligned or fitting
    nb = max(pool)
    if N >= 2 and N // nb < 2:
        smaller = ([d for d in pool if d <= N // 2]
                   or [d for d in fitting if d <= N // 2] or [1])
        nb = max(smaller)
    Lb = nb * HW
    grid = (N // nb,)

    vmem_limit = int(min(max(int(step_bytes(nb) * 1.5), 24 << 20), 48 << 20))

    kernel = functools.partial(basic_block_kernel, H=H, W=W,
                               tap_is_bf16=tap_is_bf16)

    out_flat = pl.pallas_call(
        kernel,
        out_shape=jax.ShapeDtypeStruct((C, L), jnp.float32),
        grid_spec=pltpu.PrefetchScalarGridSpec(
            num_scalar_prefetch=0,
            grid=grid,
            in_specs=[
                pl.BlockSpec((1, Lb), lambda i: (0, i)),        # edge masks
                pl.BlockSpec((C, Lb), lambda i: (0, i)),        # activations
                pl.BlockSpec((C, 9 * C), lambda i: (0, 0)),     # w1 (resident)
                pl.BlockSpec((C, 1), lambda i: (0, 0)),         # b1
                pl.BlockSpec((C, 9 * C), lambda i: (0, 0)),     # w2 (resident)
                pl.BlockSpec((C, 1), lambda i: (0, 0)),         # b2
            ],
            out_specs=pl.BlockSpec((C, Lb), lambda i: (0, i)),  # lane-dense
            scratch_shapes=[pltpu.VMEM((9 * C, Lb), tap_dtype)],
        ),
        compiler_params=pltpu.CompilerParams(
            dimension_semantics=("parallel",),
            vmem_limit_bytes=vmem_limit),
    )(mask_bits, x_flat, w1_mat, b1, w2_mat, b2)

    return out_flat.reshape(C, N, H, W).transpose(1, 0, 2, 3)   # back to NCHW


# ----------------------------- references ----------------------------------

def basic_block_ref_f32(x_nchw, w1_hwio, w2_hwio, bn1, bn2, eps=1e-5):
    """Pure-f32 reference (PyTorch BasicBlock, eval-mode BN, stride=1)."""
    def conv(x, w):
        return lax.conv_general_dilated(
            x, w, window_strides=(1, 1), padding="SAME",
            dimension_numbers=("NCHW", "HWIO", "NCHW"))

    def bn(x, p):
        g, b, m, v = (t.reshape(1, -1, 1, 1) for t in p)
        return (x - m) / jnp.sqrt(v + eps) * g + b

    out = jax.nn.relu(bn(conv(x_nchw, w1_hwio), bn1))
    out = bn(conv(out, w2_hwio), bn2)
    return jax.nn.relu(out + x_nchw)


def basic_block_ref_matched(x_nchw, w1_hwio, w2_hwio, bn1, bn2, eps=1e-5):
    """Reference reproducing the kernel's numerics (BN scale folded into bf16
    weights, bf16 activations into the conv, f32 accumulation)."""
    def fold(w, p):
        g, b, m, v = p
        s = g / jnp.sqrt(v + eps)
        return (w * s).astype(jnp.bfloat16), (b - m * s).reshape(1, -1, 1, 1)

    def conv(x, w):
        return lax.conv_general_dilated(
            x.astype(jnp.bfloat16), w, window_strides=(1, 1), padding="SAME",
            dimension_numbers=("NCHW", "HWIO", "NCHW"),
            preferred_element_type=jnp.float32)

    w1e, b1 = fold(w1_hwio, bn1)
    w2e, b2 = fold(w2_hwio, bn2)
    out = jax.nn.relu(conv(x_nchw, w1e) + b1)
    out = conv(out, w2e) + b2
    return jax.nn.relu(out + x_nchw)


if __name__ == "__main__":
    # Small shapes consistent with BasicBlock(inplanes=16, planes=16, stride=1).
    N, C, H, W = 2, 16, 16, 16

    key = jax.random.PRNGKey(0)
    ks = jax.random.split(key, 11)

    x = jax.random.normal(ks[0], (N, C, H, W), jnp.float32)          # NCHW
    w1 = jax.random.normal(ks[1], (3, 3, C, C), jnp.float32) * 0.1   # HWIO
    w2 = jax.random.normal(ks[2], (3, 3, C, C), jnp.float32) * 0.1   # HWIO

    bn1 = (jax.random.uniform(ks[3], (C,), jnp.float32, 0.5, 1.5),
           jax.random.normal(ks[4], (C,), jnp.float32) * 0.1,
           jax.random.normal(ks[5], (C,), jnp.float32) * 0.1,
           jax.random.uniform(ks[6], (C,), jnp.float32, 0.5, 1.5))
    bn2 = (jax.random.uniform(ks[7], (C,), jnp.float32, 0.5, 1.5),
           jax.random.normal(ks[8], (C,), jnp.float32) * 0.1,
           jax.random.normal(ks[9], (C,), jnp.float32) * 0.1,
           jax.random.uniform(ks[10], (C,), jnp.float32, 0.5, 1.5))

    out = jax.block_until_ready(basic_block_pallas(x, w1, w2, bn1, bn2))
    assert out.shape == (N, C, H, W)

    ref_m = basic_block_ref_matched(x, w1, w2, bn1, bn2)
    assert jnp.allclose(out, ref_m, atol=2e-3, rtol=2e-3), (
        "mismatch vs bf16-matched reference, max|diff|=%e"
        % float(jnp.max(jnp.abs(out - ref_m))))

    ref_f = basic_block_ref_f32(x, w1, w2, bn1, bn2)
    assert jnp.allclose(out, ref_f, atol=1e-1, rtol=1e-1), (
        "mismatch vs f32 reference, max|diff|=%e"
        % float(jnp.max(jnp.abs(out - ref_f))))

    print("KERNEL_OK")
</pallas_src>

<mosaic_0001>
module attributes {stable_mosaic.version = 11 : i64} {
  func.func @basic_block_kernel(%arg0: i32, %arg1: memref<1x256xi32, #tpu.memory_space<vmem>>, %arg2: memref<16x256xf32, #tpu.memory_space<vmem>>, %arg3: memref<16x144xbf16, #tpu.memory_space<vmem>>, %arg4: memref<16x1xf32, #tpu.memory_space<vmem>>, %arg5: memref<16x144xbf16, #tpu.memory_space<vmem>>, %arg6: memref<16x1xf32, #tpu.memory_space<vmem>>, %arg7: memref<16x256xf32, #tpu.memory_space<vmem>>, %arg8: memref<144x256xbf16, #tpu.memory_space<vmem>>) attributes {dimension_semantics = [#tpu.dimension_semantics<parallel>], iteration_bounds = array<i64: 2>, scalar_prefetch = 0 : i64, scratch_operands = 1 : i64, tpu.core_type = #tpu.core_type<tc>, window_params = [{transform_indices = @transform_0, window_bounds = array<i64: 1, 256>}, {transform_indices = @transform_1, window_bounds = array<i64: 16, 256>}, {pipeline_mode = #tpu.pipeline_mode<synchronous>, transform_indices = @transform_2, window_bounds = array<i64: 16, 144>}, {pipeline_mode = #tpu.pipeline_mode<synchronous>, transform_indices = @transform_3, window_bounds = array<i64: 16, 1>}, {pipeline_mode = #tpu.pipeline_mode<synchronous>, transform_indices = @transform_4, window_bounds = array<i64: 16, 144>}, {pipeline_mode = #tpu.pipeline_mode<synchronous>, transform_indices = @transform_5, window_bounds = array<i64: 16, 1>}, {transform_indices = @transform_6, window_bounds = array<i64: 16, 256>}]} {
    %c0 = arith.constant 0 : index
    %c0_0 = arith.constant 0 : index
    %0 = vector.load %arg1[%c0, %c0_0] : memref<1x256xi32, #tpu.memory_space<vmem>>, vector<1x256xi32>
    %c1_i32 = arith.constant 1 : i32
    %1 = vector.broadcast %c1_i32 : i32 to vector<1x256xi32>
    %2 = arith.andi %0, %1 : vector<1x256xi32>
    %c0_i32 = arith.constant 0 : i32
    %3 = vector.broadcast %c0_i32 : i32 to vector<1x256xi32>
    %4 = arith.cmpi ne, %2, %3 : vector<1x256xi32>
    %c2_i32 = arith.constant 2 : i32
    %5 = vector.broadcast %c2_i32 : i32 to vector<1x256xi32>
    %6 = arith.andi %0, %5 : vector<1x256xi32>
    %c0_i32_1 = arith.constant 0 : i32
    %7 = vector.broadcast %c0_i32_1 : i32 to vector<1x256xi32>
    %8 = arith.cmpi ne, %6, %7 : vector<1x256xi32>
    %c4_i32 = arith.constant 4 : i32
    %9 = vector.broadcast %c4_i32 : i32 to vector<1x256xi32>
    %10 = arith.andi %0, %9 : vector<1x256xi32>
    %c0_i32_2 = arith.constant 0 : i32
    %11 = vector.broadcast %c0_i32_2 : i32 to vector<1x256xi32>
    %12 = arith.cmpi ne, %10, %11 : vector<1x256xi32>
    %c8_i32 = arith.constant 8 : i32
    %13 = vector.broadcast %c8_i32 : i32 to vector<1x256xi32>
    %14 = arith.andi %0, %13 : vector<1x256xi32>
    %c0_i32_3 = arith.constant 0 : i32
    %15 = vector.broadcast %c0_i32_3 : i32 to vector<1x256xi32>
    %16 = arith.cmpi ne, %14, %15 : vector<1x256xi32>
    %c0_4 = arith.constant 0 : index
    %c0_5 = arith.constant 0 : index
    %17 = vector.load %arg2[%c0_4, %c0_5] : memref<16x256xf32, #tpu.memory_space<vmem>>, vector<16x256xf32>
    %c17_i32 = arith.constant 17 : i32
    %18 = tpu.dynamic_rotate %17 by %c17_i32 dim 1 : vector<16x256xf32>, i32 -> vector<16x256xf32>
    %19 = arith.andi %4, %12 : vector<1x256xi1>
    %cst = arith.constant 0.000000e+00 : f32
    %20 = vector.shape_cast %19 : vector<1x256xi1> to vector<1x256xi1>
    %21 = vector.broadcast %20 : vector<1x256xi1> to vector<16x256xi1>
    %22 = vector.broadcast %cst : f32 to vector<16x256xf32>
    %23 = arith.select %21, %18, %22 : vector<16x256xi1>, vector<16x256xf32>
    %24 = arith.truncf %23 : vector<16x256xf32> to vector<16x256xbf16>
    %c0_6 = arith.constant 0 : index
    %c0_7 = arith.constant 0 : index
    %25 = vector.load %arg8[%c0_6, %c0_7] : memref<144x256xbf16, #tpu.memory_space<vmem>>, vector<16x256xbf16>
    tpu.vector_store %arg8[%c0_6, %c0_7], %24 {strides = array<i32>} : memref<144x256xbf16, #tpu.memory_space<vmem>>, vector<16x256xbf16>,
    %c16_i32 = arith.constant 16 : i32
    %26 = tpu.dynamic_rotate %17 by %c16_i32 dim 1 : vector<16x256xf32>, i32 -> vector<16x256xf32>
    %cst_8 = arith.constant 0.000000e+00 : f32
    %27 = vector.shape_cast %4 : vector<1x256xi1> to vector<1x256xi1>
    %28 = vector.broadcast %27 : vector<1x256xi1> to vector<16x256xi1>
    %29 = vector.broadcast %cst_8 : f32 to vector<16x256xf32>
    %30 = arith.select %28, %26, %29 : vector<16x256xi1>, vector<16x256xf32>
    %31 = arith.truncf %30 : vector<16x256xf32> to vector<16x256xbf16>
    %c16 = arith.constant 16 : index
    %c0_9 = arith.constant 0 : index
    %32 = vector.load %arg8[%c16, %c0_9] : memref<144x256xbf16, #tpu.memory_space<vmem>>, vector<16x256xbf16>
    tpu.vector_store %arg8[%c16, %c0_9], %31 {strides = array<i32>} : memref<144x256xbf16, #tpu.memory_space<vmem>>, vector<16x256xbf16>,
    %c15_i32 = arith.constant 15 : i32
    %33 = tpu.dynamic_rotate %17 by %c15_i32 dim 1 : vector<16x256xf32>, i32 -> vector<16x256xf32>
    %34 = arith.andi %4, %16 : vector<1x256xi1>
    %cst_10 = arith.constant 0.000000e+00 : f32
    %35 = vector.shape_cast %34 : vector<1x256xi1> to vector<1x256xi1>
    %36 = vector.broadcast %35 : vector<1x256xi1> to vector<16x256xi1>
    %37 = vector.broadcast %cst_10 : f32 to vector<16x256xf32>
    %38 = arith.select %36, %33, %37 : vector<16x256xi1>, vector<16x256xf32>
    %39 = arith.truncf %38 : vector<16x256xf32> to vector<16x256xbf16>
    %c32 = arith.constant 32 : index
    %c0_11 = arith.constant 0 : index
    %40 = vector.load %arg8[%c32, %c0_11] : memref<144x256xbf16, #tpu.memory_space<vmem>>, vector<16x256xbf16>
    tpu.vector_store %arg8[%c32, %c0_11], %39 {strides = array<i32>} : memref<144x256xbf16, #tpu.memory_space<vmem>>, vector<16x256xbf16>,
    %c1_i32_12 = arith.constant 1 : i32
    %41 = tpu.dynamic_rotate %17 by %c1_i32_12 dim 1 : vector<16x256xf32>, i32 -> vector<16x256xf32>
    %cst_13 = arith.constant 0.000000e+00 : f32
    %42 = vector.shape_cast %12 : vector<1x256xi1> to vector<1x256xi1>
    %43 = vector.broadcast %42 : vector<1x256xi1> to vector<16x256xi1>
    %44 = vector.broadcast %cst_13 : f32 to vector<16x256xf32>
    %45 = arith.select %43, %41, %44 : vector<16x256xi1>, vector<16x256xf32>
    %46 = arith.truncf %45 : vector<16x256xf32> to vector<16x256xbf16>
    %c48 = arith.constant 48 : index
    %c0_14 = arith.constant 0 : index
    %47 = vector.load %arg8[%c48, %c0_14] : memref<144x256xbf16, #tpu.memory_space<vmem>>, vector<16x256xbf16>
    tpu.vector_store %arg8[%c48, %c0_14], %46 {strides = array<i32>} : memref<144x256xbf16, #tpu.memory_space<vmem>>, vector<16x256xbf16>,
    %48 = arith.truncf %17 : vector<16x256xf32> to vector<16x256xbf16>
    %c64 = arith.constant 64 : index
    %c0_15 = arith.constant 0 : index
    %49 = vector.load %arg8[%c64, %c0_15] : memref<144x256xbf16, #tpu.memory_space<vmem>>, vector<16x256xbf16>
    tpu.vector_store %arg8[%c64, %c0_15], %48 {strides = array<i32>} : memref<144x256xbf16, #tpu.memory_space<vmem>>, vector<16x256xbf16>,
    %c255_i32 = arith.constant 255 : i32
    %50 = tpu.dynamic_rotate %17 by %c255_i32 dim 1 : vector<16x256xf32>, i32 -> vector<16x256xf32>
    %cst_16 = arith.constant 0.000000e+00 : f32
    %51 = vector.shape_cast %16 : vector<1x256xi1> to vector<1x256xi1>
    %52 = vector.broadcast %51 : vector<1x256xi1> to vector<16x256xi1>
    %53 = vector.broadcast %cst_16 : f32 to vector<16x256xf32>
    %54 = arith.select %52, %50, %53 : vector<16x256xi1>, vector<16x256xf32>
    %55 = arith.truncf %54 : vector<16x256xf32> to vector<16x256xbf16>
    %c80 = arith.constant 80 : index
    %c0_17 = arith.constant 0 : index
    %56 = vector.load %arg8[%c80, %c0_17] : memref<144x256xbf16, #tpu.memory_space<vmem>>, vector<16x256xbf16>
    tpu.vector_store %arg8[%c80, %c0_17], %55 {strides = array<i32>} : memref<144x256xbf16, #tpu.memory_space<vmem>>, vector<16x256xbf16>,
    %c241_i32 = arith.constant 241 : i32
    %57 = tpu.dynamic_rotate %17 by %c241_i32 dim 1 : vector<16x256xf32>, i32 -> vector<16x256xf32>
    %58 = arith.andi %8, %12 : vector<1x256xi1>
    %cst_18 = arith.constant 0.000000e+00 : f32
    %59 = vector.shape_cast %58 : vector<1x256xi1> to vector<1x256xi1>
    %60 = vector.broadcast %59 : vector<1x256xi1> to vector<16x256xi1>
    %61 = vector.broadcast %cst_18 : f32 to vector<16x256xf32>
    %62 = arith.select %60, %57, %61 : vector<16x256xi1>, vector<16x256xf32>
    %63 = arith.truncf %62 : vector<16x256xf32> to vector<16x256xbf16>
    %c96 = arith.constant 96 : index
    %c0_19 = arith.constant 0 : index
    %64 = vector.load %arg8[%c96, %c0_19] : memref<144x256xbf16, #tpu.memory_space<vmem>>, vector<16x256xbf16>
    tpu.vector_store %arg8[%c96, %c0_19], %63 {strides = array<i32>} : memref<144x256xbf16, #tpu.memory_space<vmem>>, vector<16x256xbf16>,
    %c240_i32 = arith.constant 240 : i32
    %65 = tpu.dynamic_rotate %17 by %c240_i32 dim 1 : vector<16x256xf32>, i32 -> vector<16x256xf32>
    %cst_20 = arith.constant 0.000000e+00 : f32
    %66 = vector.shape_cast %8 : vector<1x256xi1> to vector<1x256xi1>
    %67 = vector.broadcast %66 : vector<1x256xi1> to vector<16x256xi1>
    %68 = vector.broadcast %cst_20 : f32 to vector<16x256xf32>
    %69 = arith.select %67, %65, %68 : vector<16x256xi1>, vector<16x256xf32>
    %70 = arith.truncf %69 : vector<16x256xf32> to vector<16x256xbf16>
    %c112 = arith.constant 112 : index
    %c0_21 = arith.constant 0 : index
    %71 = vector.load %arg8[%c112, %c0_21] : memref<144x256xbf16, #tpu.memory_space<vmem>>, vector<16x256xbf16>
    tpu.vector_store %arg8[%c112, %c0_21], %70 {strides = array<i32>} : memref<144x256xbf16, #tpu.memory_space<vmem>>, vector<16x256xbf16>,
    %c239_i32 = arith.constant 239 : i32
    %72 = tpu.dynamic_rotate %17 by %c239_i32 dim 1 : vector<16x256xf32>, i32 -> vector<16x256xf32>
    %73 = arith.andi %8, %16 : vector<1x256xi1>
    %cst_22 = arith.constant 0.000000e+00 : f32
    %74 = vector.shape_cast %73 : vector<1x256xi1> to vector<1x256xi1>
    %75 = vector.broadcast %74 : vector<1x256xi1> to vector<16x256xi1>
    %76 = vector.broadcast %cst_22 : f32 to vector<16x256xf32>
    %77 = arith.select %75, %72, %76 : vector<16x256xi1>, vector<16x256xf32>
    %78 = arith.truncf %77 : vector<16x256xf32> to vector<16x256xbf16>
    %c128 = arith.constant 128 : index
    %c0_23 = arith.constant 0 : index
    %79 = vector.load %arg8[%c128, %c0_23] : memref<144x256xbf16, #tpu.memory_space<vmem>>, vector<16x256xbf16>
    tpu.vector_store %arg8[%c128, %c0_23], %78 {strides = array<i32>} : memref<144x256xbf16, #tpu.memory_space<vmem>>, vector<16x256xbf16>,
    %c0_24 = arith.constant 0 : index
    %c0_25 = arith.constant 0 : index
    %80 = vector.load %arg8[%c0_24, %c0_25] : memref<144x256xbf16, #tpu.memory_space<vmem>>, vector<144x256xbf16>
    %c0_26 = arith.constant 0 : index
    %c0_27 = arith.constant 0 : index
    %81 = vector.load %arg3[%c0_26, %c0_27] : memref<16x144xbf16, #tpu.memory_space<vmem>>, vector<16x144xbf16>
    %cst_28 = arith.constant dense<0.000000e+00> : vector<16x256xf32>
    %82 = tpu.matmul %81, %80, %cst_28 {dimension_numbers = #tpu.dot_dimension_numbers<[1], [0], [0], [1], [0, 0, 1, 1], [], []>} : vector<16x144xbf16>, vector<144x256xbf16>, vector<16x256xf32> -> vector<16x256xf32>
    %c0_29 = arith.constant 0 : index
    %c0_30 = arith.constant 0 : index
    %83 = vector.load %arg4[%c0_29, %c0_30] : memref<16x1xf32, #tpu.memory_space<vmem>>, vector<16x1xf32>
    %84 = vector.broadcast %83 : vector<16x1xf32> to vector<16x256xf32>
    %85 = arith.addf %82, %84 : vector<16x256xf32>
    %cst_31 = arith.constant 0.000000e+00 : f32
    %86 = vector.broadcast %cst_31 : f32 to vector<16x256xf32>
    %87 = arith.maximumf %85, %86 : vector<16x256xf32>
    %c17_i32_32 = arith.constant 17 : i32
    %88 = tpu.dynamic_rotate %87 by %c17_i32_32 dim 1 : vector<16x256xf32>, i32 -> vector<16x256xf32>
    %89 = arith.andi %4, %12 : vector<1x256xi1>
    %cst_33 = arith.constant 0.000000e+00 : f32
    %90 = vector.shape_cast %89 : vector<1x256xi1> to vector<1x256xi1>
    %91 = vector.broadcast %90 : vector<1x256xi1> to vector<16x256xi1>
    %92 = vector.broadcast %cst_33 : f32 to vector<16x256xf32>
    %93 = arith.select %91, %88, %92 : vector<16x256xi1>, vector<16x256xf32>
    %94 = arith.truncf %93 : vector<16x256xf32> to vector<16x256xbf16>
    %c0_34 = arith.constant 0 : index
    %c0_35 = arith.constant 0 : index
    %95 = vector.load %arg8[%c0_34, %c0_35] : memref<144x256xbf16, #tpu.memory_space<vmem>>, vector<16x256xbf16>
    tpu.vector_store %arg8[%c0_34, %c0_35], %94 {strides = array<i32>} : memref<144x256xbf16, #tpu.memory_space<vmem>>, vector<16x256xbf16>,
    %c16_i32_36 = arith.constant 16 : i32
    %96 = tpu.dynamic_rotate %87 by %c16_i32_36 dim 1 : vector<16x256xf32>, i32 -> vector<16x256xf32>
    %cst_37 = arith.constant 0.000000e+00 : f32
    %97 = vector.shape_cast %4 : vector<1x256xi1> to vector<1x256xi1>
    %98 = vector.broadcast %97 : vector<1x256xi1> to vector<16x256xi1>
    %99 = vector.broadcast %cst_37 : f32 to vector<16x256xf32>
    %100 = arith.select %98, %96, %99 : vector<16x256xi1>, vector<16x256xf32>
    %101 = arith.truncf %100 : vector<16x256xf32> to vector<16x256xbf16>
    %c16_38 = arith.constant 16 : index
    %c0_39 = arith.constant 0 : index
    %102 = vector.load %arg8[%c16_38, %c0_39] : memref<144x256xbf16, #tpu.memory_space<vmem>>, vector<16x256xbf16>
    tpu.vector_store %arg8[%c16_38, %c0_39], %101 {strides = array<i32>} : memref<144x256xbf16, #tpu.memory_space<vmem>>, vector<16x256xbf16>,
    %c15_i32_40 = arith.constant 15 : i32
    %103 = tpu.dynamic_rotate %87 by %c15_i32_40 dim 1 : vector<16x256xf32>, i32 -> vector<16x256xf32>
    %104 = arith.andi %4, %16 : vector<1x256xi1>
    %cst_41 = arith.constant 0.000000e+00 : f32
    %105 = vector.shape_cast %104 : vector<1x256xi1> to vector<1x256xi1>
    %106 = vector.broadcast %105 : vector<1x256xi1> to vector<16x256xi1>
    %107 = vector.broadcast %cst_41 : f32 to vector<16x256xf32>
    %108 = arith.select %106, %103, %107 : vector<16x256xi1>, vector<16x256xf32>
    %109 = arith.truncf %108 : vector<16x256xf32> to vector<16x256xbf16>
    %c32_42 = arith.constant 32 : index
    %c0_43 = arith.constant 0 : index
    %110 = vector.load %arg8[%c32_42, %c0_43] : memref<144x256xbf16, #tpu.memory_space<vmem>>, vector<16x256xbf16>
    tpu.vector_store %arg8[%c32_42, %c0_43], %109 {strides = array<i32>} : memref<144x256xbf16, #tpu.memory_space<vmem>>, vector<16x256xbf16>,
    %c1_i32_44 = arith.constant 1 : i32
    %111 = tpu.dynamic_rotate %87 by %c1_i32_44 dim 1 : vector<16x256xf32>, i32 -> vector<16x256xf32>
    %cst_45 = arith.constant 0.000000e+00 : f32
    %112 = vector.shape_cast %12 : vector<1x256xi1> to vector<1x256xi1>
    %113 = vector.broadcast %112 : vector<1x256xi1> to vector<16x256xi1>
    %114 = vector.broadcast %cst_45 : f32 to vector<16x256xf32>
    %115 = arith.select %113, %111, %114 : vector<16x256xi1>, vector<16x256xf32>
    %116 = arith.truncf %115 : vector<16x256xf32> to vector<16x256xbf16>
    %c48_46 = arith.constant 48 : index
    %c0_47 = arith.constant 0 : index
    %117 = vector.load %arg8[%c48_46, %c0_47] : memref<144x256xbf16, #tpu.memory_space<vmem>>, vector<16x256xbf16>
    tpu.vector_store %arg8[%c48_46, %c0_47], %116 {strides = array<i32>} : memref<144x256xbf16, #tpu.memory_space<vmem>>, vector<16x256xbf16>,
    %118 = arith.truncf %87 : vector<16x256xf32> to vector<16x256xbf16>
    %c64_48 = arith.constant 64 : index
    %c0_49 = arith.constant 0 : index
    %119 = vector.load %arg8[%c64_48, %c0_49] : memref<144x256xbf16, #tpu.memory_space<vmem>>, vector<16x256xbf16>
    tpu.vector_store %arg8[%c64_48, %c0_49], %118 {strides = array<i32>} : memref<144x256xbf16, #tpu.memory_space<vmem>>, vector<16x256xbf16>,
    %c255_i32_50 = arith.constant 255 : i32
    %120 = tpu.dynamic_rotate %87 by %c255_i32_50 dim 1 : vector<16x256xf32>, i32 -> vector<16x256xf32>
    %cst_51 = arith.constant 0.000000e+00 : f32
    %121 = vector.shape_cast %16 : vector<1x256xi1> to vector<1x256xi1>
    %122 = vector.broadcast %121 : vector<1x256xi1> to vector<16x256xi1>
    %123 = vector.broadcast %cst_51 : f32 to vector<16x256xf32>
    %124 = arith.select %122, %120, %123 : vector<16x256xi1>, vector<16x256xf32>
    %125 = arith.truncf %124 : vector<16x256xf32> to vector<16x256xbf16>
    %c80_52 = arith.constant 80 : index
    %c0_53 = arith.constant 0 : index
    %126 = vector.load %arg8[%c80_52, %c0_53] : memref<144x256xbf16, #tpu.memory_space<vmem>>, vector<16x256xbf16>
    tpu.vector_store %arg8[%c80_52, %c0_53], %125 {strides = array<i32>} : memref<144x256xbf16, #tpu.memory_space<vmem>>, vector<16x256xbf16>,
    %c241_i32_54 = arith.constant 241 : i32
    %127 = tpu.dynamic_rotate %87 by %c241_i32_54 dim 1 : vector<16x256xf32>, i32 -> vector<16x256xf32>
    %128 = arith.andi %8, %12 : vector<1x256xi1>
    %cst_55 = arith.constant 0.000000e+00 : f32
    %129 = vector.shape_cast %128 : vector<1x256xi1> to vector<1x256xi1>
    %130 = vector.broadcast %129 : vector<1x256xi1> to vector<16x256xi1>
    %131 = vector.broadcast %cst_55 : f32 to vector<16x256xf32>
    %132 = arith.select %130, %127, %131 : vector<16x256xi1>, vector<16x256xf32>
    %133 = arith.truncf %132 : vector<16x256xf32> to vector<16x256xbf16>
    %c96_56 = arith.constant 96 : index
    %c0_57 = arith.constant 0 : index
    %134 = vector.load %arg8[%c96_56, %c0_57] : memref<144x256xbf16, #tpu.memory_space<vmem>>, vector<16x256xbf16>
    tpu.vector_store %arg8[%c96_56, %c0_57], %133 {strides = array<i32>} : memref<144x256xbf16, #tpu.memory_space<vmem>>, vector<16x256xbf16>,
    %c240_i32_58 = arith.constant 240 : i32
    %135 = tpu.dynamic_rotate %87 by %c240_i32_58 dim 1 : vector<16x256xf32>, i32 -> vector<16x256xf32>
    %cst_59 = arith.constant 0.000000e+00 : f32
    %136 = vector.shape_cast %8 : vector<1x256xi1> to vector<1x256xi1>
    %137 = vector.broadcast %136 : vector<1x256xi1> to vector<16x256xi1>
    %138 = vector.broadcast %cst_59 : f32 to vector<16x256xf32>
    %139 = arith.select %137, %135, %138 : vector<16x256xi1>, vector<16x256xf32>
    %140 = arith.truncf %139 : vector<16x256xf32> to vector<16x256xbf16>
    %c112_60 = arith.constant 112 : index
    %c0_61 = arith.constant 0 : index
    %141 = vector.load %arg8[%c112_60, %c0_61] : memref<144x256xbf16, #tpu.memory_space<vmem>>, vector<16x256xbf16>
    tpu.vector_store %arg8[%c112_60, %c0_61], %140 {strides = array<i32>} : memref<144x256xbf16, #tpu.memory_space<vmem>>, vector<16x256xbf16>,
    %c239_i32_62 = arith.constant 239 : i32
    %142 = tpu.dynamic_rotate %87 by %c239_i32_62 dim 1 : vector<16x256xf32>, i32 -> vector<16x256xf32>
    %143 = arith.andi %8, %16 : vector<1x256xi1>
    %cst_63 = arith.constant 0.000000e+00 : f32
    %144 = vector.shape_cast %143 : vector<1x256xi1> to vector<1x256xi1>
    %145 = vector.broadcast %144 : vector<1x256xi1> to vector<16x256xi1>
    %146 = vector.broadcast %cst_63 : f32 to vector<16x256xf32>
    %147 = arith.select %145, %142, %146 : vector<16x256xi1>, vector<16x256xf32>
    %148 = arith.truncf %147 : vector<16x256xf32> to vector<16x256xbf16>
    %c128_64 = arith.constant 128 : index
    %c0_65 = arith.constant 0 : index
    %149 = vector.load %arg8[%c128_64, %c0_65] : memref<144x256xbf16, #tpu.memory_space<vmem>>, vector<16x256xbf16>
    tpu.vector_store %arg8[%c128_64, %c0_65], %148 {strides = array<i32>} : memref<144x256xbf16, #tpu.memory_space<vmem>>, vector<16x256xbf16>,
    %c0_66 = arith.constant 0 : index
    %c0_67 = arith.constant 0 : index
    %150 = vector.load %arg8[%c0_66, %c0_67] : memref<144x256xbf16, #tpu.memory_space<vmem>>, vector<144x256xbf16>
    %c0_68 = arith.constant 0 : index
    %c0_69 = arith.constant 0 : index
    %151 = vector.load %arg5[%c0_68, %c0_69] : memref<16x144xbf16, #tpu.memory_space<vmem>>, vector<16x144xbf16>
    %cst_70 = arith.constant dense<0.000000e+00> : vector<16x256xf32>
    %152 = tpu.matmul %151, %150, %cst_70 {dimension_numbers = #tpu.dot_dimension_numbers<[1], [0], [0], [1], [0, 0, 1, 1], [], []>} : vector<16x144xbf16>, vector<144x256xbf16>, vector<16x256xf32> -> vector<16x256xf32>
    %c0_71 = arith.constant 0 : index
    %c0_72 = arith.constant 0 : index
    %153 = vector.load %arg6[%c0_71, %c0_72] : memref<16x1xf32, #tpu.memory_space<vmem>>, vector<16x1xf32>
    %154 = vector.broadcast %153 : vector<16x1xf32> to vector<16x256xf32>
    %155 = arith.addf %152, %154 : vector<16x256xf32>
    %156 = arith.addf %155, %17 : vector<16x256xf32>
    %cst_73 = arith.constant 0.000000e+00 : f32
    %157 = vector.broadcast %cst_73 : f32 to vector<16x256xf32>
    %158 = arith.maximumf %156, %157 : vector<16x256xf32>
    %c0_74 = arith.constant 0 : index
    %c0_75 = arith.constant 0 : index
    %159 = vector.load %arg7[%c0_74, %c0_75] : memref<16x256xf32, #tpu.memory_space<vmem>>, vector<16x256xf32>
    tpu.vector_store %arg7[%c0_74, %c0_75], %158 {strides = array<i32>} : memref<16x256xf32, #tpu.memory_space<vmem>>, vector<16x256xf32>,
    return
  }
  func.func @transform_0(%arg0: i32) -> (i32, i32) {
    %c0_i32 = arith.constant 0 : i32
    %c0_i32_0 = arith.constant 0 : i32
    return %c0_i32, %arg0 : i32, i32
  }
  func.func @transform_1(%arg0: i32) -> (i32, i32) {
    %c0_i32 = arith.constant 0 : i32
    %c0_i32_0 = arith.constant 0 : i32
    return %c0_i32, %arg0 : i32, i32
  }
  func.func @transform_2(%arg0: i32) -> (i32, i32) {
    %c0_i32 = arith.constant 0 : i32
    %c0_i32_0 = arith.constant 0 : i32
    %c0_i32_1 = arith.constant 0 : i32
    return %c0_i32, %c0_i32_0 : i32, i32
  }
  func.func @transform_3(%arg0: i32) -> (i32, i32) {
    %c0_i32 = arith.constant 0 : i32
    %c0_i32_0 = arith.constant 0 : i32
    %c0_i32_1 = arith.constant 0 : i32
    return %c0_i32, %c0_i32_0 : i32, i32
  }
  func.func @transform_4(%arg0: i32) -> (i32, i32) {
    %c0_i32 = arith.constant 0 : i32
    %c0_i32_0 = arith.constant 0 : i32
    %c0_i32_1 = arith.constant 0 : i32
    return %c0_i32, %c0_i32_0 : i32, i32
  }
  func.func @transform_5(%arg0: i32) -> (i32, i32) {
    %c0_i32 = arith.constant 0 : i32
    %c0_i32_0 = arith.constant 0 : i32
    %c0_i32_1 = arith.constant 0 : i32
    return %c0_i32, %c0_i32_0 : i32, i32
  }
  func.func @transform_6(%arg0: i32) -> (i32, i32) {
    %c0_i32 = arith.constant 0 : i32
    %c0_i32_0 = arith.constant 0 : i32
    return %c0_i32, %arg0 : i32, i32
  }
}

</mosaic_0001>

<llo_original>
// kernel: tpu_custom_call.1
$region0: #{tpu_custom_call.1}
  #allocation0 [shape = 'u32[]', space=smem, size = 0x4, offset = 0x4, fixed_abs, tag = 'smem constant byte address 0x4 - core index']
  #allocation1 [shape = 'u32[144,128]{1,0:T(1,128)}', space=vmem, size = 0x12000, scoped, tag = 'internal scratch']
  #allocation2 [shape = 'bf16[144,256]{1,0:T(8,128)(2,1)}', space=vmem, size = 0x12000, scoped, tag = 'scratch operand']
  %s0 = inlined_call_operand.hbm [shape: s32[1,512], index: 0, kind: input, shape index: {}]
  %s1 = inlined_call_operand.hbm [shape: f32[16,512], index: 1, kind: input, shape index: {}]
  %s2 = inlined_call_operand.vmem [shape: bf16[16,144], index: 2, kind: input, shape index: {}]
  %s3 = inlined_call_operand.vmem [shape: f32[16,1], index: 3, kind: input, shape index: {}]
  %s4 = inlined_call_operand.vmem [shape: bf16[16,144], index: 4, kind: input, shape index: {}]
  %s5 = inlined_call_operand.vmem [shape: f32[16,1], index: 5, kind: input, shape index: {}]
  %s6 = inlined_call_operand.hbm [shape: f32[16,512], index: 6, kind: output, shape index: {}]
  %s7 = sld [smem:[#allocation0]]
  $region65: #{tpu_custom_call.1} parent=0
    _
  %s9 = ssub.s32 1, %s7
  %s10 = scalar_select 0, %s9, %s7
  $region1: #{tpu_custom_call.1} parent=0
    #allocation3 [shape = 'u8[2048]{0}', space=vmem, size = 0x800, scoped, tag = 'input window, operand 0']
    #allocation4 [shape = 's32[2]{0}', space=sflag, size = 0x8, scoped, tag = 'scoped memory for tpu_custom_call.1']
    #allocation5 [shape = 's32[2]{0}', space=sflag, size = 0x8, scoped, tag = 'scoped memory for tpu_custom_call.1']
    #allocation6 [shape = 'u8[32768]{0}', space=vmem, size = 0x8000, scoped, tag = 'input window, operand 1']
    #allocation7 [shape = 's32[2]{0}', space=sflag, size = 0x8, scoped, tag = 'scoped memory for tpu_custom_call.1']
    #allocation8 [shape = 'u8[32768]{0}', space=vmem, size = 0x8000, scoped, tag = 'output window, operand 0']
    %11 = vsyncpa [#allocation4], 0
    %s12 = scalar_lea.sflag [#allocation4], 1
    %13 = vsyncpa %s12, 0
    %14 = vsyncpa [#allocation7], 0
    %s15 = scalar_lea.sflag [#allocation7], 1
    %16 = vsyncpa %s15, 0
    %17 = vsyncpa [#allocation5], 0
    %s18 = scalar_lea.sflag [#allocation5], 1
    %19 = vsyncpa %s18, 0
    loop: start=0, step=1, limit=4
    $region2: #{tpu_custom_call.1} parent=1 // loop_pre_header
      _
    $region3: #{tpu_custom_call.1} parent=1 // loop_header
      %s21 = sphi 0, %s25
      %p22 = scmp.ge.s32.totalorder %s21, 4
      %s31 = sphi 0, %s33
      %s34 = sphi 0, %s31
      %s35 = sphi 0, %s34
      %s51 = sphi 0, %s35
      %s57 = sphi 0, %s59
      %s60 = sphi 0, %s57
      %s61 = sphi 0, %s60
      %s77 = sphi 0, %s61
      %s81 = sphi 0, %s81
      %s83 = sphi 0, %s81
      %s84 = sphi 0, %s83
      %s98 = sphi 0, %s84
      %s102 = sphi 0, %s102
      %s104 = sphi 0, %s102
      %s105 = sphi 0, %s104
      %s119 = sphi 0, %s105
      %s123 = sphi 0, %s123
      %s125 = sphi 0, %s123
      %s126 = sphi 0, %s125
      %s140 = sphi 0, %s126
      %s144 = sphi 0, %s144
      %s146 = sphi 0, %s144
      %s147 = sphi 0, %s146
      %s161 = sphi 0, %s147
      %s167 = sphi 0, %s169
      %s170 = sphi 0, %s167
      %s171 = sphi 0, %s170
      %s187 = sphi 0, %s171
    $region4: #{tpu_custom_call.1} parent=1 // loop_header_branch
      %24 = sbr.rel (%p22) target = $region8
    $region5: #{tpu_custom_call.1} parent=1 // loop_body
      %s26 = ssub.s32 %s21, 1
      %s27 = ssub.s32 %s21, 2
      %s28 = sadd.s32 %s21, 1
      %s29 = ssub.s32 %s21, %s28
      %p30 = scmp.eq.s32.totalorder %s29, 0
      %s32 = sadd.s32 %s31, 1
      %s33 = scalar_select %p30, %s31, %s32
      %p36 = pneg %p30
      %p37 = scmp.eq.s32.totalorder %s21, 1
      %p38 = por %p36, %p37
      %p39 = scmp.ne.s32.totalorder %s31, %s34
      %p40 = scmp.eq.s32.totalorder %s21, 0
      %p41 = por %p39, %p40
      %p42 = scmp.ne.s32.totalorder %s31, %s34
      %p43 = scmp.eq.s32.totalorder %s26, 1
      %p44 = por %p42, %p43
      %p45 = scmp.ne.s32.totalorder %s34, %s35
      %p46 = scmp.eq.s32.totalorder %s26, 0
      %p47 = por %p45, %p46
      %p48 = scmp.ne.s32.totalorder %s34, %s35
      %p49 = scmp.eq.s32.totalorder %s27, 1
      %p50 = por %p48, %p49
      %p52 = scmp.ne.s32.totalorder %s35, %s51
      %p53 = scmp.eq.s32.totalorder %s27, 0
      %p54 = por %p52, %p53
      %s55 = ssub.s32 %s21, %s28
      %p56 = scmp.eq.s32.totalorder %s55, 0
      %s58 = sadd.s32 %s57, 1
      %s59 = scalar_select %p56, %s57, %s58
      %p62 = pneg %p56
      %p63 = scmp.eq.s32.totalorder %s21, 1
      %p64 = por %p62, %p63
      %p65 = scmp.ne.s32.totalorder %s57, %s60
      %p66 = scmp.eq.s32.totalorder %s21, 0
      %p67 = por %p65, %p66
      %p68 = scmp.ne.s32.totalorder %s57, %s60
      %p69 = scmp.eq.s32.totalorder %s26, 1
      %p70 = por %p68, %p69
      %p71 = scmp.ne.s32.totalorder %s60, %s61
      %p72 = scmp.eq.s32.totalorder %s26, 0
      %p73 = por %p71, %p72
      %p74 = scmp.ne.s32.totalorder %s60, %s61
      %p75 = scmp.eq.s32.totalorder %s27, 1
      %p76 = por %p74, %p75
      %p78 = scmp.ne.s32.totalorder %s61, %s77
      %p79 = scmp.eq.s32.totalorder %s27, 0
      %p80 = por %p78, %p79
      %s82 = sadd.s32 %s81, 1
      %p85 = scmp.eq.s32.totalorder %s21, 1
      %p86 = scmp.ne.s32.totalorder %s81, %s83
      %p87 = scmp.eq.s32.totalorder %s21, 0
      %p88 = por %p86, %p87
      %p89 = scmp.ne.s32.totalorder %s81, %s83
      %p90 = scmp.eq.s32.totalorder %s26, 1
      %p91 = por %p89, %p90
      %p92 = scmp.ne.s32.totalorder %s83, %s84
      %p93 = scmp.eq.s32.totalorder %s26, 0
      %p94 = por %p92, %p93
      %p95 = scmp.ne.s32.totalorder %s83, %s84
      %p96 = scmp.eq.s32.totalorder %s27, 1
      %p97 = por %p95, %p96
      %p99 = scmp.ne.s32.totalorder %s84, %s98
      %p100 = scmp.eq.s32.totalorder %s27, 0
      %p101 = por %p99, %p100
      %s103 = sadd.s32 %s102, 1
      %p106 = scmp.eq.s32.totalorder %s21, 1
      %p107 = scmp.ne.s32.totalorder %s102, %s104
      %p108 = scmp.eq.s32.totalorder %s21, 0
      %p109 = por %p107, %p108
      %p110 = scmp.ne.s32.totalorder %s102, %s104
      %p111 = scmp.eq.s32.totalorder %s26, 1
      %p112 = por %p110, %p111
      %p113 = scmp.ne.s32.totalorder %s104, %s105
      %p114 = scmp.eq.s32.totalorder %s26, 0
      %p115 = por %p113, %p114
      %p116 = scmp.ne.s32.totalorder %s104, %s105
      %p117 = scmp.eq.s32.totalorder %s27, 1
      %p118 = por %p116, %p117
      %p120 = scmp.ne.s32.totalorder %s105, %s119
      %p121 = scmp.eq.s32.totalorder %s27, 0
      %p122 = por %p120, %p121
      %s124 = sadd.s32 %s123, 1
      %p127 = scmp.eq.s32.totalorder %s21, 1
      %p128 = scmp.ne.s32.totalorder %s123, %s125
      %p129 = scmp.eq.s32.totalorder %s21, 0
      %p130 = por %p128, %p129
      %p131 = scmp.ne.s32.totalorder %s123, %s125
      %p132 = scmp.eq.s32.totalorder %s26, 1
      %p133 = por %p131, %p132
      %p134 = scmp.ne.s32.totalorder %s125, %s126
      %p135 = scmp.eq.s32.totalorder %s26, 0
      %p136 = por %p134, %p135
      %p137 = scmp.ne.s32.totalorder %s125, %s126
      %p138 = scmp.eq.s32.totalorder %s27, 1
      %p139 = por %p137, %p138
      %p141 = scmp.ne.s32.totalorder %s126, %s140
      %p142 = scmp.eq.s32.totalorder %s27, 0
      %p143 = por %p141, %p142
      %s145 = sadd.s32 %s144, 1
      %p148 = scmp.eq.s32.totalorder %s21, 1
      %p149 = scmp.ne.s32.totalorder %s144, %s146
      %p150 = scmp.eq.s32.totalorder %s21, 0
      %p151 = por %p149, %p150
      %p152 = scmp.ne.s32.totalorder %s144, %s146
      %p153 = scmp.eq.s32.totalorder %s26, 1
      %p154 = por %p152, %p153
      %p155 = scmp.ne.s32.totalorder %s146, %s147
      %p156 = scmp.eq.s32.totalorder %s26, 0
      %p157 = por %p155, %p156
      %p158 = scmp.ne.s32.totalorder %s146, %s147
      %p159 = scmp.eq.s32.totalorder %s27, 1
      %p160 = por %p158, %p159
      %p162 = scmp.ne.s32.totalorder %s147, %s161
      %p163 = scmp.eq.s32.totalorder %s27, 0
      %p164 = por %p162, %p163
      %s165 = ssub.s32 %s21, %s28
      %p166 = scmp.eq.s32.totalorder %s165, 0
      %s168 = sadd.s32 %s167, 1
      %s169 = scalar_select %p166, %s167, %s168
      %p172 = pneg %p166
      %p173 = scmp.eq.s32.totalorder %s21, 1
      %p174 = por %p172, %p173
      %p175 = scmp.ne.s32.totalorder %s167, %s170
      %p176 = scmp.eq.s32.totalorder %s21, 0
      %p177 = por %p175, %p176
      %p178 = scmp.ne.s32.totalorder %s167, %s170
      %p179 = scmp.eq.s32.totalorder %s26, 1
      %p180 = por %p178, %p179
      %p181 = scmp.ne.s32.totalorder %s170, %s171
      %p182 = scmp.eq.s32.totalorder %s26, 0
      %p183 = por %p181, %p182
      %p184 = scmp.ne.s32.totalorder %s170, %s171
      %p185 = scmp.eq.s32.totalorder %s27, 1
      %p186 = por %p184, %p185
      %p188 = scmp.ne.s32.totalorder %s171, %s187
      %p189 = scmp.eq.s32.totalorder %s27, 0
      %p190 = por %p188, %p189
      %p191 = scmp.le.s32.totalorder 1, %s21
      %p192 = scmp.lt.s32.totalorder %s21, 3
      %p193 = pnand %p191, %p192
      %p194 = pneg %p193
      // Predicated region
      $region9: #{tpu_custom_call.1} parent=5 // pred_check
        _
      $region10: #{tpu_custom_call.1} parent=5 // pred_check_branch
        %196 = sbr.rel (%p193) target = $region12
      $region11: #{tpu_custom_call.1} parent=5 // pred_region
        %s197 = ssub.s32 %s21, 1
        // Predicated region
        $region13: #{tpu_custom_call.1} parent=11 // pred_check
          %p198 = pneg %p94
        $region14: #{tpu_custom_call.1} parent=11 // pred_check_branch
          %200 = sbr.rel (%p198) target = $region16
        $region15: #{tpu_custom_call.1} parent=11 // pred_region
          _
        $region16: #{tpu_custom_call.1} parent=11 // pred_fallthru
          _
        // Predicated region
        $region17: #{tpu_custom_call.1} parent=11 // pred_check
          %p201 = pneg %p115
        $region18: #{tpu_custom_call.1} parent=11 // pred_check_branch
          %203 = sbr.rel (%p201) target = $region20
        $region19: #{tpu_custom_call.1} parent=11 // pred_region
          _
        $region20: #{tpu_custom_call.1} parent=11 // pred_fallthru
          _
        // Predicated region
        $region21: #{tpu_custom_call.1} parent=11 // pred_check
          %p204 = pneg %p136
        $region22: #{tpu_custom_call.1} parent=11 // pred_check_branch
          %206 = sbr.rel (%p204) target = $region24
        $region23: #{tpu_custom_call.1} parent=11 // pred_region
          _
        $region24: #{tpu_custom_call.1} parent=11 // pred_fallthru
          _
        // Predicated region
        $region25: #{tpu_custom_call.1} parent=11 // pred_check
          %p207 = pneg %p157
        $region26: #{tpu_custom_call.1} parent=11 // pred_check_branch
          %209 = sbr.rel (%p207) target = $region28
        $region27: #{tpu_custom_call.1} parent=11 // pred_region
          _
        $region28: #{tpu_custom_call.1} parent=11 // pred_fallthru
          _
      $region12: #{tpu_custom_call.1} parent=5 // pred_fallthru
        _
      %p210 = scmp.lt.s32.totalorder %s21, 2
      // Predicated region
      $region29: #{tpu_custom_call.1} parent=5 // pred_check
        %p211 = pneg %p210
      $region30: #{tpu_custom_call.1} parent=5 // pred_check_branch
        %213 = sbr.rel (%p211) target = $region32
      $region31: #{tpu_custom_call.1} parent=5 // pred_region
        // Predicated region
        $region33: #{tpu_custom_call.1} parent=31 // pred_check
          %p214 = pneg %p41
        $region34: #{tpu_custom_call.1} parent=31 // pred_check_branch
          %216 = sbr.rel (%p214) target = $region36
        $region35: #{tpu_custom_call.1} parent=31 // pred_region
          %s217 = sand.u32 %s31, 1
          %s218 = scalar_lea.sflag [#allocation4], %s217
          %s219 = sand.u32 %s31, 1
          %s220 = smul.addr %s219, 2
          %s221 = scalar_lea.vmem [#allocation3], %s220
          %s222 = smul.u32 2, %s21
          %s224 = ssub.s32 32, 32
          %225 = vsyncadd %s218, %s224
          %s226 = smul.addr %s222, 16
          %s227 = scalar_lea.hbm %s0, %s226
          %s229 = sshll.u32 %s221, 4
          %s230 = int_to_ptr.vmem [resolvable:$true] %s229
          %232 = dma.hbm_to_vmem [thread:$0]  %s227, 32, %s230, %s218
        $region36: #{tpu_custom_call.1} parent=31 // pred_fallthru
          _
        // Predicated region
        $region37: #{tpu_custom_call.1} parent=31 // pred_check
          %p233 = pneg %p67
        $region38: #{tpu_custom_call.1} parent=31 // pred_check_branch
          %235 = sbr.rel (%p233) target = $region40
        $region39: #{tpu_custom_call.1} parent=31 // pred_region
          %s236 = sand.u32 %s57, 1
          %s237 = scalar_lea.sflag [#allocation7], %s236
          %s238 = sand.u32 %s57, 1
          %s239 = smul.addr %s238, 32
          %s240 = scalar_lea.vmem [#allocation6], %s239
          %s241 = smul.u32 2, %s21
          %s243 = ssub.s32 512, 512
          %244 = vsyncadd %s237, %s243
          %s245 = smul.addr %s241, 128
          %s246 = scalar_lea.hbm %s1, %s245
          %s247 = sshll.u32 %s240, 4
          %s248 = int_to_ptr.vmem [resolvable:$true] %s247
          %253 = dma.hbm_to_vmem [thread:$0]  %s246, 512, %s248, %s237, 512, 256, 16
        $region40: #{tpu_custom_call.1} parent=31 // pred_fallthru
          _
      $region32: #{tpu_custom_call.1} parent=5 // pred_fallthru
        _
      %p254 = scmp.le.s32.totalorder 1, %s21
      %p255 = scmp.lt.s32.totalorder %s21, 3
      %p256 = pnand %p254, %p255
      %p257 = pneg %p256
      // Predicated region
      $region41: #{tpu_custom_call.1} parent=5 // pred_check
        _
      $region42: #{tpu_custom_call.1} parent=5 // pred_check_branch
        %259 = sbr.rel (%p256) target = $region44
      $region43: #{tpu_custom_call.1} parent=5 // pred_region
        %s260 = ssub.s32 %s21, 1
        %s261 = sand.u32 %s34, 1
        %s262 = scalar_lea.sflag [#allocation4], %s261
        %s263 = sand.u32 %s34, 1
        %s264 = smul.addr %s263, 2
        %s265 = scalar_lea.vmem [#allocation3], %s264
        // Predicated region
        $region45: #{tpu_custom_call.1} parent=43 // pred_check
          %p266 = pneg %p47
        $region46: #{tpu_custom_call.1} parent=43 // pred_check_branch
          %268 = sbr.rel (%p266) target = $region48
        $region47: #{tpu_custom_call.1} parent=43 // pred_region
          %269 = dma.done %s262, 32
        $region48: #{tpu_custom_call.1} parent=43 // pred_fallthru
          _
        %s270 = sand.u32 %s60, 1
        %s271 = scalar_lea.sflag [#allocation7], %s270
        %s272 = sand.u32 %s60, 1
        %s273 = smul.addr %s272, 32
        %s274 = scalar_lea.vmem [#allocation6], %s273
        // Predicated region
        $region49: #{tpu_custom_call.1} parent=43 // pred_check
          %p275 = pneg %p73
        $region50: #{tpu_custom_call.1} parent=43 // pred_check_branch
          %277 = sbr.rel (%p275) target = $region52
        $region51: #{tpu_custom_call.1} parent=43 // pred_region
          %278 = dma.done %s271, 512
        $region52: #{tpu_custom_call.1} parent=43 // pred_fallthru
          _
        %s279 = sand.u32 %s34, 1
        %s280 = scalar_lea.sflag [#allocation4], %s279
        %s281 = sand.u32 %s34, 1
        %s282 = smul.addr %s281, 2
        %s283 = scalar_lea.vmem [#allocation3], %s282
        %p284 = pneg %p47
        %p285 = pneg %p44
        %s286 = sand.u32 %s60, 1
        %s287 = scalar_lea.sflag [#allocation7], %s286
        %s288 = sand.u32 %s60, 1
        %s289 = smul.addr %s288, 32
        %s290 = scalar_lea.vmem [#allocation6], %s289
        %p291 = pneg %p73
        %p292 = pneg %p70
        %p293 = pneg %p94
        %p294 = pneg %p91
        %p295 = pneg %p115
        %p296 = pneg %p112
        %p297 = pneg %p136
        %p298 = pneg %p133
        %p299 = pneg %p157
        %p300 = pneg %p154
        %p301 = pneg %p183
        %p302 = pneg %p180
        %s303 = sand.u32 %s170, 1
        %s304 = scalar_lea.sflag [#allocation5], %s303
        %s305 = sand.u32 %s170, 1
        %s306 = smul.addr %s305, 32
        %s307 = scalar_lea.vmem [#allocation8], %s306
        %s308 = smul.u32 2, %s26
        %s309 = smul.u32 2, %s26
        %s310 = smul.u32 2, %s26
        %v312 = vld [vmem:[%s265] sm:$0x3]
        %v313 = vand.u32 %v312, 1
        %vm314 = vcmp.ne.s32.totalorder %v313, 0
        %v315 = vand.u32 %v312, 2
        %vm316 = vcmp.ne.s32.totalorder %v315, 0
        %v317 = vand.u32 %v312, 4
        %vm318 = vcmp.ne.s32.totalorder %v317, 0
        %v319 = vand.u32 %v312, 8
        %vm320 = vcmp.ne.s32.totalorder %v319, 0
        %v321 = vld [vmem:[%s274] sm:$0xff]
        %v322 = vld [vmem:[%s274 + $0x8] sm:$0xff]
        %v323 = vld [vmem:[%s274 + $0x10] sm:$0xff]
        %v324 = vld [vmem:[%s274 + $0x18] sm:$0xff]
        %325 = vrot.lane.b32.xlu0 %v321, 17
        %v326 = vpop.permute.xlu0 %325
        %327 = vrot.lane.b32.xlu0 %v323, 17
        %v328 = vpop.permute.xlu0 %327
        %329 = vrot.lane.b32.xlu0 %v322, 17
        %v330 = vpop.permute.xlu0 %329
        %331 = vrot.lane.b32.xlu0 %v324, 17
        %v332 = vpop.permute.xlu0 %331
        %v333 = vlaneseq
        %v334 = vand.u32 %v333, 127
        %vm335 = vcmp.lt.s32.totalorder %v334, 17
        %v336 = vsel %vm335, %v326, %v330
        %v337 = vsel %vm335, %v328, %v332
        %v338 = vsel %vm335, %v330, %v326
        %v339 = vsel %vm335, %v332, %v328
        %vm340 = vmand %vm314, %vm318
        %v341 = vsel %vm340, 1, 0
        %v342 = vlaneseq
        %v343 = vshrl.u32 %v342, 7
        %v344 = vsub.s32 0, %v343
        %v345 = vrot.slane %v341, %v344
        %v346 = vlaneseq
        %v347 = vshrl.u32 %v346, 7
        %v348 = vsub.s32 1, %v347
        %v349 = vrot.slane %v341, %v348
        %vm350 = vcmp.eq.s32.totalorder %v345, 1
        %vm351 = vcmp.eq.s32.totalorder %v349, 1
        %v352 = vsel %vm350, %v338, 0.0
        %v353 = vsel %vm351, %v336, 0.0
        %v354 = vsel %vm350, %v339, 0.0
        %v355 = vsel %vm351, %v337, 0.0
        %v356 = vpack.c.bf16 %v354, %v352
        %v357 = vpack.c.bf16 %v355, %v353
        %v360 = vunpack.c.l.b16 %v356
        %v361 = vunpack.c.l.b16 %v357
        %v362 = vunpack.c.h.b16 %v356
        %v363 = vunpack.c.h.b16 %v357
        %v364 = vpack.c.b16 %v361, %v360
        %v365 = vpack.c.b16 %v363, %v362
        %368 = vst [vmem:[#allocation2] sm:$0xff] %v364
        %369 = vst [vmem:[#allocation2 + $0x8] sm:$0xff] %v365
        %370 = vrot.lane.b32.xlu0 %v321, 16
        %v371 = vpop.permute.xlu0 %370
        %372 = vrot.lane.b32.xlu0 %v323, 16
        %v373 = vpop.permute.xlu0 %372
        %374 = vrot.lane.b32.xlu0 %v322, 16
        %v375 = vpop.permute.xlu0 %374
        %376 = vrot.lane.b32.xlu0 %v324, 16
        %v377 = vpop.permute.xlu0 %376
        %vm378 = vcmp.lt.s32.totalorder %v334, 16
        %v379 = vsel %vm378, %v371, %v375
        %v380 = vsel %vm378, %v373, %v377
        %v381 = vsel %vm378, %v375, %v371
        %v382 = vsel %vm378, %v377, %v373
        %v383 = vsel %vm314, 1, 0
        %v384 = vlaneseq
        %v385 = vshrl.u32 %v384, 7
        %v386 = vsub.s32 0, %v385
        %v387 = vrot.slane %v383, %v386
        %v388 = vlaneseq
        %v389 = vshrl.u32 %v388, 7
        %v390 = vsub.s32 1, %v389
        %v391 = vrot.slane %v383, %v390
        %vm392 = vcmp.eq.s32.totalorder %v387, 1
        %vm393 = vcmp.eq.s32.totalorder %v391, 1
        %v394 = vsel %vm392, %v381, 0.0
        %v395 = vsel %vm393, %v379, 0.0
        %v396 = vsel %vm392, %v382, 0.0
        %v397 = vsel %vm393, %v380, 0.0
        %v398 = vpack.c.bf16 %v396, %v394
        %v399 = vpack.c.bf16 %v397, %v395
        %v402 = vunpack.c.l.b16 %v398
        %v403 = vunpack.c.l.b16 %v399
        %v404 = vunpack.c.h.b16 %v398
        %v405 = vunpack.c.h.b16 %v399
        %v406 = vpack.c.b16 %v403, %v402
        %v407 = vpack.c.b16 %v405, %v404
        %410 = vst [vmem:[#allocation2 + $0x10] sm:$0xff] %v406
        %411 = vst [vmem:[#allocation2 + $0x18] sm:$0xff] %v407
        %412 = vrot.lane.b32.xlu0 %v321, 15
        %v413 = vpop.permute.xlu0 %412
        %414 = vrot.lane.b32.xlu0 %v323, 15
        %v415 = vpop.permute.xlu0 %414
        %416 = vrot.lane.b32.xlu0 %v322, 15
        %v417 = vpop.permute.xlu0 %416
        %418 = vrot.lane.b32.xlu0 %v324, 15
        %v419 = vpop.permute.xlu0 %418
        %vm420 = vcmp.lt.s32.totalorder %v334, 15
        %v421 = vsel %vm420, %v413, %v417
        %v422 = vsel %vm420, %v415, %v419
        %v423 = vsel %vm420, %v417, %v413
        %v424 = vsel %vm420, %v419, %v415
        %vm425 = vmand %vm314, %vm320
        %v426 = vsel %vm425, 1, 0
        %v427 = vlaneseq
        %v428 = vshrl.u32 %v427, 7
        %v429 = vsub.s32 0, %v428
        %v430 = vrot.slane %v426, %v429
        %v431 = vlaneseq
        %v432 = vshrl.u32 %v431, 7
        %v433 = vsub.s32 1, %v432
        %v434 = vrot.slane %v426, %v433
        %vm435 = vcmp.eq.s32.totalorder %v430, 1
        %vm436 = vcmp.eq.s32.totalorder %v434, 1
        %v437 = vsel %vm435, %v423, 0.0
        %v438 = vsel %vm436, %v421, 0.0
        %v439 = vsel %vm435, %v424, 0.0
        %v440 = vsel %vm436, %v422, 0.0
        %v441 = vpack.c.bf16 %v439, %v437
        %v442 = vpack.c.bf16 %v440, %v438
        %v445 = vunpack.c.l.b16 %v441
        %v446 = vunpack.c.l.b16 %v442
        %v447 = vunpack.c.h.b16 %v441
        %v448 = vunpack.c.h.b16 %v442
        %v449 = vpack.c.b16 %v446, %v445
        %v450 = vpack.c.b16 %v448, %v447
        %453 = vst [vmem:[#allocation2 + $0x20] sm:$0xff] %v449
        %454 = vst [vmem:[#allocation2 + $0x28] sm:$0xff] %v450
        %455 = vrot.lane.b32.xlu0 %v321, 1
        %v456 = vpop.permute.xlu0 %455
        %457 = vrot.lane.b32.xlu0 %v323, 1
        %v458 = vpop.permute.xlu0 %457
        %459 = vrot.lane.b32.xlu0 %v322, 1
        %v460 = vpop.permute.xlu0 %459
        %461 = vrot.lane.b32.xlu0 %v324, 1
        %v462 = vpop.permute.xlu0 %461
        %vm463 = vcmp.lt.s32.totalorder %v334, 1
        %v464 = vsel %vm463, %v456, %v460
        %v465 = vsel %vm463, %v458, %v462
        %v466 = vsel %vm463, %v460, %v456
        %v467 = vsel %vm463, %v462, %v458
        %v468 = vsel %vm318, 1, 0
        %v469 = vlaneseq
        %v470 = vshrl.u32 %v469, 7
        %v471 = vsub.s32 0, %v470
        %v472 = vrot.slane %v468, %v471
        %v473 = vlaneseq
        %v474 = vshrl.u32 %v473, 7
        %v475 = vsub.s32 1, %v474
        %v476 = vrot.slane %v468, %v475
        %vm477 = vcmp.eq.s32.totalorder %v472, 1
        %vm478 = vcmp.eq.s32.totalorder %v476, 1
        %v479 = vsel %vm477, %v466, 0.0
        %v480 = vsel %vm478, %v464, 0.0
        %v481 = vsel %vm477, %v467, 0.0
        %v482 = vsel %vm478, %v465, 0.0
        %v483 = vpack.c.bf16 %v481, %v479
        %v484 = vpack.c.bf16 %v482, %v480
        %v487 = vunpack.c.l.b16 %v483
        %v488 = vunpack.c.l.b16 %v484
        %v489 = vunpack.c.h.b16 %v483
        %v490 = vunpack.c.h.b16 %v484
        %v491 = vpack.c.b16 %v488, %v487
        %v492 = vpack.c.b16 %v490, %v489
        %495 = vst [vmem:[#allocation2 + $0x30] sm:$0xff] %v491
        %496 = vst [vmem:[#allocation2 + $0x38] sm:$0xff] %v492
        %v497 = vpack.c.bf16 %v323, %v321
        %v498 = vpack.c.bf16 %v324, %v322
        %v501 = vunpack.c.l.b16 %v497
        %v502 = vunpack.c.l.b16 %v498
        %v503 = vunpack.c.h.b16 %v497
        %v504 = vunpack.c.h.b16 %v498
        %v505 = vpack.c.b16 %v502, %v501
        %v506 = vpack.c.b16 %v504, %v503
        %509 = vst [vmem:[#allocation2 + $0x40] sm:$0xff] %v505
        %510 = vst [vmem:[#allocation2 + $0x48] sm:$0xff] %v506
        %511 = vrot.lane.b32.xlu0 %v321, 127
        %v512 = vpop.permute.xlu0 %511
        %513 = vrot.lane.b32.xlu0 %v323, 127
        %v514 = vpop.permute.xlu0 %513
        %515 = vrot.lane.b32.xlu0 %v322, 127
        %v516 = vpop.permute.xlu0 %515
        %517 = vrot.lane.b32.xlu0 %v324, 127
        %v518 = vpop.permute.xlu0 %517
        %vm519 = vcmp.lt.s32.totalorder %v334, 127
        %v520 = vsel %vm519, %v512, %v516
        %v521 = vsel %vm519, %v514, %v518
        %v522 = vsel %vm519, %v516, %v512
        %v523 = vsel %vm519, %v518, %v514
        %v524 = vsel %vm320, 1, 0
        %v525 = vlaneseq
        %v526 = vshrl.u32 %v525, 7
        %v527 = vsub.s32 0, %v526
        %v528 = vrot.slane %v524, %v527
        %v529 = vlaneseq
        %v530 = vshrl.u32 %v529, 7
        %v531 = vsub.s32 1, %v530
        %v532 = vrot.slane %v524, %v531
        %vm533 = vcmp.eq.s32.totalorder %v528, 1
        %vm534 = vcmp.eq.s32.totalorder %v532, 1
        %v535 = vsel %vm533, %v520, 0.0
        %v536 = vsel %vm534, %v522, 0.0
        %v537 = vsel %vm533, %v521, 0.0
        %v538 = vsel %vm534, %v523, 0.0
        %v539 = vpack.c.bf16 %v537, %v535
        %v540 = vpack.c.bf16 %v538, %v536
        %v543 = vunpack.c.l.b16 %v539
        %v544 = vunpack.c.l.b16 %v540
        %v545 = vunpack.c.h.b16 %v539
        %v546 = vunpack.c.h.b16 %v540
        %v547 = vpack.c.b16 %v544, %v543
        %v548 = vpack.c.b16 %v546, %v545
        %551 = vst [vmem:[#allocation2 + $0x50] sm:$0xff] %v547
        %552 = vst [vmem:[#allocation2 + $0x58] sm:$0xff] %v548
        %553 = vrot.lane.b32.xlu0 %v321, 113
        %v554 = vpop.permute.xlu0 %553
        %555 = vrot.lane.b32.xlu0 %v323, 113
        %v556 = vpop.permute.xlu0 %555
        %557 = vrot.lane.b32.xlu0 %v322, 113
        %v558 = vpop.permute.xlu0 %557
        %559 = vrot.lane.b32.xlu0 %v324, 113
        %v560 = vpop.permute.xlu0 %559
        %vm561 = vcmp.lt.s32.totalorder %v334, 113
        %v562 = vsel %vm561, %v554, %v558
        %v563 = vsel %vm561, %v556, %v560
        %v564 = vsel %vm561, %v558, %v554
        %v565 = vsel %vm561, %v560, %v556
        %vm566 = vmand %vm316, %vm318
        %v567 = vsel %vm566, 1, 0
        %v568 = vlaneseq
        %v569 = vshrl.u32 %v568, 7
        %v570 = vsub.s32 0, %v569
        %v571 = vrot.slane %v567, %v570
        %v572 = vlaneseq
        %v573 = vshrl.u32 %v572, 7
        %v574 = vsub.s32 1, %v573
        %v575 = vrot.slane %v567, %v574
        %vm576 = vcmp.eq.s32.totalorder %v571, 1
        %vm577 = vcmp.eq.s32.totalorder %v575, 1
        %v578 = vsel %vm576, %v562, 0.0
        %v579 = vsel %vm577, %v564, 0.0
        %v580 = vsel %vm576, %v563, 0.0
        %v581 = vsel %vm577, %v565, 0.0
        %v582 = vpack.c.bf16 %v580, %v578
        %v583 = vpack.c.bf16 %v581, %v579
        %v586 = vunpack.c.l.b16 %v582
        %v587 = vunpack.c.l.b16 %v583
        %v588 = vunpack.c.h.b16 %v582
        %v589 = vunpack.c.h.b16 %v583
        %v590 = vpack.c.b16 %v587, %v586
        %v591 = vpack.c.b16 %v589, %v588
        %594 = vst [vmem:[#allocation2 + $0x60] sm:$0xff] %v590
        %595 = vst [vmem:[#allocation2 + $0x68] sm:$0xff] %v591
        %596 = vrot.lane.b32.xlu0 %v321, 112
        %v597 = vpop.permute.xlu0 %596
        %598 = vrot.lane.b32.xlu0 %v323, 112
        %v599 = vpop.permute.xlu0 %598
        %600 = vrot.lane.b32.xlu0 %v322, 112
        %v601 = vpop.permute.xlu0 %600
        %602 = vrot.lane.b32.xlu0 %v324, 112
        %v603 = vpop.permute.xlu0 %602
        %vm604 = vcmp.lt.s32.totalorder %v334, 112
        %v605 = vsel %vm604, %v597, %v601
        %v606 = vsel %vm604, %v599, %v603
        %v607 = vsel %vm604, %v601, %v597
        %v608 = vsel %vm604, %v603, %v599
        %v609 = vsel %vm316, 1, 0
        %v610 = vlaneseq
        %v611 = vshrl.u32 %v610, 7
        %v612 = vsub.s32 0, %v611
        %v613 = vrot.slane %v609, %v612
        %v614 = vlaneseq
        %v615 = vshrl.u32 %v614, 7
        %v616 = vsub.s32 1, %v615
        %v617 = vrot.slane %v609, %v616
        %vm618 = vcmp.eq.s32.totalorder %v613, 1
        %vm619 = vcmp.eq.s32.totalorder %v617, 1
        %v620 = vsel %vm618, %v605, 0.0
        %v621 = vsel %vm619, %v607, 0.0
        %v622 = vsel %vm618, %v606, 0.0
        %v623 = vsel %vm619, %v608, 0.0
        %v624 = vpack.c.bf16 %v622, %v620
        %v625 = vpack.c.bf16 %v623, %v621
        %v628 = vunpack.c.l.b16 %v624
        %v629 = vunpack.c.l.b16 %v625
        %v630 = vunpack.c.h.b16 %v624
        %v631 = vunpack.c.h.b16 %v625
        %v632 = vpack.c.b16 %v629, %v628
        %v633 = vpack.c.b16 %v631, %v630
        %636 = vst [vmem:[#allocation2 + $0x70] sm:$0xff] %v632
        %637 = vst [vmem:[#allocation2 + $0x78] sm:$0xff] %v633
        %638 = vrot.lane.b32.xlu0 %v321, 111
        %v639 = vpop.permute.xlu0 %638
        %640 = vrot.lane.b32.xlu0 %v323, 111
        %v641 = vpop.permute.xlu0 %640
        %642 = vrot.lane.b32.xlu0 %v322, 111
        %v643 = vpop.permute.xlu0 %642
        %644 = vrot.lane.b32.xlu0 %v324, 111
        %v645 = vpop.permute.xlu0 %644
        %vm646 = vcmp.lt.s32.totalorder %v334, 111
        %v647 = vsel %vm646, %v639, %v643
        %v648 = vsel %vm646, %v641, %v645
        %v649 = vsel %vm646, %v643, %v639
        %v650 = vsel %vm646, %v645, %v641
        %vm651 = vmand %vm316, %vm320
        %v652 = vsel %vm651, 1, 0
        %v653 = vlaneseq
        %v654 = vshrl.u32 %v653, 7
        %v655 = vsub.s32 0, %v654
        %v656 = vrot.slane %v652, %v655
        %v657 = vlaneseq
        %v658 = vshrl.u32 %v657, 7
        %v659 = vsub.s32 1, %v658
        %v660 = vrot.slane %v652, %v659
        %vm661 = vcmp.eq.s32.totalorder %v656, 1
        %vm662 = vcmp.eq.s32.totalorder %v660, 1
        %v663 = vsel %vm661, %v647, 0.0
        %v664 = vsel %vm662, %v649, 0.0
        %v665 = vsel %vm661, %v648, 0.0
        %v666 = vsel %vm662, %v650, 0.0
        %v667 = vpack.c.bf16 %v665, %v663
        %v668 = vpack.c.bf16 %v666, %v664
        %v671 = vunpack.c.l.b16 %v667
        %v672 = vunpack.c.l.b16 %v668
        %v673 = vunpack.c.h.b16 %v667
        %v674 = vunpack.c.h.b16 %v668
        %v675 = vpack.c.b16 %v672, %v671
        %v676 = vpack.c.b16 %v674, %v673
        %679 = vst [vmem:[#allocation2 + $0x80] sm:$0xff] %v675
        %680 = vst [vmem:[#allocation2 + $0x88] sm:$0xff] %v676
        %v681 = vld [vmem:[#allocation2] sm:$0xff]
        %v682 = vld [vmem:[#allocation2 + $0x8] sm:$0xff]
        %v683 = vld [vmem:[#allocation2 + $0x10] sm:$0xff]
        %v684 = vld [vmem:[#allocation2 + $0x18] sm:$0xff]
        %v685 = vld [vmem:[#allocation2 + $0x20] sm:$0xff]
        %v686 = vld [vmem:[#allocation2 + $0x28] sm:$0xff]
        %v687 = vld [vmem:[#allocation2 + $0x30] sm:$0xff]
        %v688 = vld [vmem:[#allocation2 + $0x38] sm:$0xff]
        %v689 = vld [vmem:[#allocation2 + $0x40] sm:$0xff]
        %v690 = vld [vmem:[#allocation2 + $0x48] sm:$0xff]
        %v691 = vld [vmem:[#allocation2 + $0x50] sm:$0xff]
        %v692 = vld [vmem:[#allocation2 + $0x58] sm:$0xff]
        %v693 = vld [vmem:[#allocation2 + $0x60] sm:$0xff]
        %v694 = vld [vmem:[#allocation2 + $0x68] sm:$0xff]
        %v695 = vld [vmem:[#allocation2 + $0x70] sm:$0xff]
        %v696 = vld [vmem:[#allocation2 + $0x78] sm:$0xff]
        %v697 = vld [vmem:[#allocation2 + $0x80] sm:$0xff]
        %v698 = vld [vmem:[#allocation2 + $0x88] sm:$0xff]
        %v699 = vld [vmem:[%s2] sm:$0xff]
        %v700 = vld [vmem:[%s2 + $0x8] sm:$0xff]
        %v701 = vld [vmem:[%s3] sm:$0xff]
        %v702 = vld [vmem:[%s3 + $0x8] sm:$0xff]
        %704 = vset.pattern.permute.xlu0 0
        %705 = vperm.xlu0 %704, %v701
        %v706 = vpop.permute.xlu0 %705
        %709 = vset.pattern.permute.xlu0 0
        %710 = vperm.xlu0 %709, %v702
        %v711 = vpop.permute.xlu0 %710
        %v715 = vunpack.c.l.b16 %v699
        %v716 = vunpack.c.h.b16 %v699
        %v717 = vunpack.c.l.b16 %v700
        %v718 = vunpack.c.h.b16 %v700
        %v719 = vpack.c.b16 %v717, %v715
        %v720 = vpack.c.b16 %v718, %v716
        %v740 = vunpack.c.l.b16 %v681
        %v741 = vunpack.c.h.b16 %v681
        %v742 = vunpack.c.l.b16 %v682
        %v743 = vunpack.c.h.b16 %v682
        %v744 = vunpack.c.l.b16 %v683
        %v745 = vunpack.c.h.b16 %v683
        %v746 = vunpack.c.l.b16 %v684
        %v747 = vunpack.c.h.b16 %v684
        %v748 = vunpack.c.l.b16 %v685
        %v749 = vunpack.c.h.b16 %v685
        %v750 = vunpack.c.l.b16 %v686
        %v751 = vunpack.c.h.b16 %v686
        %v752 = vunpack.c.l.b16 %v687
        %v753 = vunpack.c.h.b16 %v687
        %v754 = vunpack.c.l.b16 %v688
        %v755 = vunpack.c.h.b16 %v688
        %v756 = vunpack.c.l.b16 %v689
        %v757 = vunpack.c.h.b16 %v689
        %v758 = vunpack.c.l.b16 %v690
        %v759 = vunpack.c.h.b16 %v690
        %v760 = vunpack.c.l.b16 %v691
        %v761 = vunpack.c.h.b16 %v691
        %v762 = vunpack.c.l.b16 %v692
        %v763 = vunpack.c.h.b16 %v692
        %v764 = vunpack.c.l.b16 %v693
        %v765 = vunpack.c.h.b16 %v693
        %v766 = vunpack.c.l.b16 %v694
        %v767 = vunpack.c.h.b16 %v694
        %v768 = vunpack.c.l.b16 %v695
        %v769 = vunpack.c.h.b16 %v695
        %v770 = vunpack.c.l.b16 %v696
        %v771 = vunpack.c.h.b16 %v696
        %v772 = vunpack.c.l.b16 %v697
        %v773 = vunpack.c.h.b16 %v697
        %v774 = vunpack.c.l.b16 %v698
        %v775 = vunpack.c.h.b16 %v698
        %v776 = vpack.c.b16 %v742, %v740
        %v777 = vpack.c.b16 %v743, %v741
        %v778 = vpack.c.b16 %v746, %v744
        %v779 = vpack.c.b16 %v747, %v745
        %v780 = vpack.c.b16 %v750, %v748
        %v781 = vpack.c.b16 %v751, %v749
        %v782 = vpack.c.b16 %v754, %v752
        %v783 = vpack.c.b16 %v755, %v753
        %v784 = vpack.c.b16 %v758, %v756
        %v785 = vpack.c.b16 %v759, %v757
        %v786 = vpack.c.b16 %v762, %v760
        %v787 = vpack.c.b16 %v763, %v761
        %v788 = vpack.c.b16 %v766, %v764
        %v789 = vpack.c.b16 %v767, %v765
        %v790 = vpack.c.b16 %v770, %v768
        %v791 = vpack.c.b16 %v771, %v769
        %v792 = vpack.c.b16 %v774, %v772
        %v793 = vpack.c.b16 %v775, %v773
        %vm812 = vcmask 130048
        %v814 = vsel %vm812, %v720, 0
        %816 = vmatprep.subr.bf16.mxu0 %v791
        %817 = vmatpush1.bf16.msra.mxu0 %v790
        %818 = vmatprep.subr.bf16.mxu0 %v789
        %819 = vmatpush1.bf16.msra.mxu0 %v788
        %820 = vmatprep.subr.bf16.mxu0 %v787
        %821 = vmatpush1.bf16.msra.mxu0 %v786
        %822 = vmatprep.subr.bf16.mxu0 %v785
        %823 = vmatpush1.bf16.msra.mxu0 %v784
        %824 = vmatprep.subr.bf16.mxu0 %v783
        %825 = vmatpush1.bf16.msra.mxu0 %v782
        %826 = vmatprep.subr.bf16.mxu0 %v781
        %827 = vmatpush1.bf16.msra.mxu0 %v780
        %828 = vmatprep.subr.bf16.mxu0 %v779
        %829 = vmatpush1.bf16.msra.mxu0 %v778
        %830 = vmatprep.subr.bf16.mxu0 %v777
        %831 = vmatpush1.bf16.msra.mxu0 %v776
        %832 = vmatprep.subr.bf16.mxu0 0
        %833 = vmatpush2.bf16.msra.mxu0 0
        %834 = vmatprep.subr.bf16.mxu0 0
        %835 = vmatpush2.bf16.msra.mxu0 0
        %836 = vmatprep.subr.bf16.mxu0 0
        %837 = vmatpush2.bf16.msra.mxu0 0
        %838 = vmatprep.subr.bf16.mxu0 0
        %839 = vmatpush2.bf16.msra.mxu0 0
        %840 = vmatprep.subr.bf16.mxu0 0
        %841 = vmatpush2.bf16.msra.mxu0 0
        %842 = vmatprep.subr.bf16.mxu0 0
        %843 = vmatpush2.bf16.msra.mxu0 0
        %844 = vmatprep.subr.bf16.mxu0 0
        %845 = vmatpush2.bf16.msra.mxu0 0
        %846 = vmatprep.subr.bf16.mxu0 %v793
        %847 = vmatpush2.bf16.msra.mxu0 %v792
        %848 = vmatprep.mubr.bf16.mxu0 %v814
        %849 = vmatmul.mubr.bf16.gmra.mxu0 %v719
        %v850 = vpop.f32.mrf.mxu0
        %v851 = vadd.f32 %v706, %v850
        %v852 = vpop.f32.mrf.mxu0
        %v853 = vadd.f32 %v706, %v852
        %v854 = vpop.f32.mrf.mxu0
        %v855 = vadd.f32 %v711, %v854
        %v856 = vpop.f32.mrf.mxu0
        %v857 = vadd.f32 %v711, %v856
        %858 = vdwg.mxu0
        %v859 = vmax.f32 %v851, 0.0
        %v860 = vmax.f32 %v853, 0.0
        %v861 = vmax.f32 %v855, 0.0
        %v862 = vmax.f32 %v857, 0.0
        %863 = vrot.lane.b32.xlu0 %v859, 17
        %v864 = vpop.permute.xlu0 %863
        %865 = vrot.lane.b32.xlu0 %v861, 17
        %v866 = vpop.permute.xlu0 %865
        %867 = vrot.lane.b32.xlu0 %v860, 17
        %v868 = vpop.permute.xlu0 %867
        %869 = vrot.lane.b32.xlu0 %v862, 17
        %v870 = vpop.permute.xlu0 %869
        %v871 = vsel %vm335, %v864, %v868
        %v872 = vsel %vm335, %v866, %v870
        %v873 = vsel %vm335, %v868, %v864
        %v874 = vsel %vm335, %v870, %v866
        %v875 = vsel %vm350, %v873, 0.0
        %v876 = vsel %vm351, %v871, 0.0
        %v877 = vsel %vm350, %v874, 0.0
        %v878 = vsel %vm351, %v872, 0.0
        %v879 = vpack.c.bf16 %v877, %v875
        %v880 = vpack.c.bf16 %v878, %v876
        %v883 = vunpack.c.l.b16 %v879
        %v884 = vunpack.c.l.b16 %v880
        %v885 = vunpack.c.h.b16 %v879
        %v886 = vunpack.c.h.b16 %v880
        %v887 = vpack.c.b16 %v884, %v883
        %v888 = vpack.c.b16 %v886, %v885
        %891 = vst [vmem:[#allocation2] sm:$0xff] %v887
        %892 = vst [vmem:[#allocation2 + $0x8] sm:$0xff] %v888
        %893 = vrot.lane.b32.xlu0 %v859, 16
        %v894 = vpop.permute.xlu0 %893
        %895 = vrot.lane.b32.xlu0 %v861, 16
        %v896 = vpop.permute.xlu0 %895
        %897 = vrot.lane.b32.xlu0 %v860, 16
        %v898 = vpop.permute.xlu0 %897
        %899 = vrot.lane.b32.xlu0 %v862, 16
        %v900 = vpop.permute.xlu0 %899
        %v901 = vsel %vm378, %v894, %v898
        %v902 = vsel %vm378, %v896, %v900
        %v903 = vsel %vm378, %v898, %v894
        %v904 = vsel %vm378, %v900, %v896
        %v905 = vsel %vm392, %v903, 0.0
        %v906 = vsel %vm393, %v901, 0.0
        %v907 = vsel %vm392, %v904, 0.0
        %v908 = vsel %vm393, %v902, 0.0
        %v909 = vpack.c.bf16 %v907, %v905
        %v910 = vpack.c.bf16 %v908, %v906
        %v913 = vunpack.c.l.b16 %v909
        %v914 = vunpack.c.l.b16 %v910
        %v915 = vunpack.c.h.b16 %v909
        %v916 = vunpack.c.h.b16 %v910
        %v917 = vpack.c.b16 %v914, %v913
        %v918 = vpack.c.b16 %v916, %v915
        %921 = vst [vmem:[#allocation2 + $0x10] sm:$0xff] %v917
        %922 = vst [vmem:[#allocation2 + $0x18] sm:$0xff] %v918
        %923 = vrot.lane.b32.xlu0 %v859, 15
        %v924 = vpop.permute.xlu0 %923
        %925 = vrot.lane.b32.xlu0 %v861, 15
        %v926 = vpop.permute.xlu0 %925
        %927 = vrot.lane.b32.xlu0 %v860, 15
        %v928 = vpop.permute.xlu0 %927
        %929 = vrot.lane.b32.xlu0 %v862, 15
        %v930 = vpop.permute.xlu0 %929
        %v931 = vsel %vm420, %v924, %v928
        %v932 = vsel %vm420, %v926, %v930
        %v933 = vsel %vm420, %v928, %v924
        %v934 = vsel %vm420, %v930, %v926
        %v935 = vsel %vm435, %v933, 0.0
        %v936 = vsel %vm436, %v931, 0.0
        %v937 = vsel %vm435, %v934, 0.0
        %v938 = vsel %vm436, %v932, 0.0
        %v939 = vpack.c.bf16 %v937, %v935
        %v940 = vpack.c.bf16 %v938, %v936
        %v943 = vunpack.c.l.b16 %v939
        %v944 = vunpack.c.l.b16 %v940
        %v945 = vunpack.c.h.b16 %v939
        %v946 = vunpack.c.h.b16 %v940
        %v947 = vpack.c.b16 %v944, %v943
        %v948 = vpack.c.b16 %v946, %v945
        %951 = vst [vmem:[#allocation2 + $0x20] sm:$0xff] %v947
        %952 = vst [vmem:[#allocation2 + $0x28] sm:$0xff] %v948
        %953 = vrot.lane.b32.xlu0 %v859, 1
        %v954 = vpop.permute.xlu0 %953
        %955 = vrot.lane.b32.xlu0 %v861, 1
        %v956 = vpop.permute.xlu0 %955
        %957 = vrot.lane.b32.xlu0 %v860, 1
        %v958 = vpop.permute.xlu0 %957
        %959 = vrot.lane.b32.xlu0 %v862, 1
        %v960 = vpop.permute.xlu0 %959
        %v961 = vsel %vm463, %v954, %v958
        %v962 = vsel %vm463, %v956, %v960
        %v963 = vsel %vm463, %v958, %v954
        %v964 = vsel %vm463, %v960, %v956
        %v965 = vsel %vm477, %v963, 0.0
        %v966 = vsel %vm478, %v961, 0.0
        %v967 = vsel %vm477, %v964, 0.0
        %v968 = vsel %vm478, %v962, 0.0
        %v969 = vpack.c.bf16 %v967, %v965
        %v970 = vpack.c.bf16 %v968, %v966
        %v973 = vunpack.c.l.b16 %v969
        %v974 = vunpack.c.l.b16 %v970
        %v975 = vunpack.c.h.b16 %v969
        %v976 = vunpack.c.h.b16 %v970
        %v977 = vpack.c.b16 %v974, %v973
        %v978 = vpack.c.b16 %v976, %v975
        %981 = vst [vmem:[#allocation2 + $0x30] sm:$0xff] %v977
        %982 = vst [vmem:[#allocation2 + $0x38] sm:$0xff] %v978
        %v983 = vpack.c.bf16 %v861, %v859
        %v984 = vpack.c.bf16 %v862, %v860
        %v987 = vunpack.c.l.b16 %v983
        %v988 = vunpack.c.l.b16 %v984
        %v989 = vunpack.c.h.b16 %v983
        %v990 = vunpack.c.h.b16 %v984
        %v991 = vpack.c.b16 %v988, %v987
        %v992 = vpack.c.b16 %v990, %v989
        %995 = vst [vmem:[#allocation2 + $0x40] sm:$0xff] %v991
        %996 = vst [vmem:[#allocation2 + $0x48] sm:$0xff] %v992
        %997 = vrot.lane.b32.xlu0 %v859, 127
        %v998 = vpop.permute.xlu0 %997
        %999 = vrot.lane.b32.xlu0 %v861, 127
        %v1000 = vpop.permute.xlu0 %999
        %1001 = vrot.lane.b32.xlu0 %v860, 127
        %v1002 = vpop.permute.xlu0 %1001
        %1003 = vrot.lane.b32.xlu0 %v862, 127
        %v1004 = vpop.permute.xlu0 %1003
        %v1005 = vsel %vm519, %v998, %v1002
        %v1006 = vsel %vm519, %v1000, %v1004
        %v1007 = vsel %vm519, %v1002, %v998
        %v1008 = vsel %vm519, %v1004, %v1000
        %v1009 = vsel %vm533, %v1005, 0.0
        %v1010 = vsel %vm534, %v1007, 0.0
        %v1011 = vsel %vm533, %v1006, 0.0
        %v1012 = vsel %vm534, %v1008, 0.0
        %v1013 = vpack.c.bf16 %v1011, %v1009
        %v1014 = vpack.c.bf16 %v1012, %v1010
        %v1017 = vunpack.c.l.b16 %v1013
        %v1018 = vunpack.c.l.b16 %v1014
        %v1019 = vunpack.c.h.b16 %v1013
        %v1020 = vunpack.c.h.b16 %v1014
        %v1021 = vpack.c.b16 %v1018, %v1017
        %v1022 = vpack.c.b16 %v1020, %v1019
        %1025 = vst [vmem:[#allocation2 + $0x50] sm:$0xff] %v1021
        %1026 = vst [vmem:[#allocation2 + $0x58] sm:$0xff] %v1022
        %1027 = vrot.lane.b32.xlu0 %v859, 113
        %v1028 = vpop.permute.xlu0 %1027
        %1029 = vrot.lane.b32.xlu0 %v861, 113
        %v1030 = vpop.permute.xlu0 %1029
        %1031 = vrot.lane.b32.xlu0 %v860, 113
        %v1032 = vpop.permute.xlu0 %1031
        %1033 = vrot.lane.b32.xlu0 %v862, 113
        %v1034 = vpop.permute.xlu0 %1033
        %v1035 = vsel %vm561, %v1028, %v1032
        %v1036 = vsel %vm561, %v1030, %v1034
        %v1037 = vsel %vm561, %v1032, %v1028
        %v1038 = vsel %vm561, %v1034, %v1030
        %v1039 = vsel %vm576, %v1035, 0.0
        %v1040 = vsel %vm577, %v1037, 0.0
        %v1041 = vsel %vm576, %v1036, 0.0
        %v1042 = vsel %vm577, %v1038, 0.0
        %v1043 = vpack.c.bf16 %v1041, %v1039
        %v1044 = vpack.c.bf16 %v1042, %v1040
        %v1047 = vunpack.c.l.b16 %v1043
        %v1048 = vunpack.c.l.b16 %v1044
        %v1049 = vunpack.c.h.b16 %v1043
        %v1050 = vunpack.c.h.b16 %v1044
        %v1051 = vpack.c.b16 %v1048, %v1047
        %v1052 = vpack.c.b16 %v1050, %v1049
        %1055 = vst [vmem:[#allocation2 + $0x60] sm:$0xff] %v1051
        %1056 = vst [vmem:[#allocation2 + $0x68] sm:$0xff] %v1052
        %1057 = vrot.lane.b32.xlu0 %v859, 112
        %v1058 = vpop.permute.xlu0 %1057
        %1059 = vrot.lane.b32.xlu0 %v861, 112
        %v1060 = vpop.permute.xlu0 %1059
        %1061 = vrot.lane.b32.xlu0 %v860, 112
        %v1062 = vpop.permute.xlu0 %1061
        %1063 = vrot.lane.b32.xlu0 %v862, 112
        %v1064 = vpop.permute.xlu0 %1063
        %v1065 = vsel %vm604, %v1058, %v1062
        %v1066 = vsel %vm604, %v1060, %v1064
        %v1067 = vsel %vm604, %v1062, %v1058
        %v1068 = vsel %vm604, %v1064, %v1060
        %v1069 = vsel %vm618, %v1065, 0.0
        %v1070 = vsel %vm619, %v1067, 0.0
        %v1071 = vsel %vm618, %v1066, 0.0
        %v1072 = vsel %vm619, %v1068, 0.0
        %v1073 = vpack.c.bf16 %v1071, %v1069
        %v1074 = vpack.c.bf16 %v1072, %v1070
        %v1077 = vunpack.c.l.b16 %v1073
        %v1078 = vunpack.c.l.b16 %v1074
        %v1079 = vunpack.c.h.b16 %v1073
        %v1080 = vunpack.c.h.b16 %v1074
        %v1081 = vpack.c.b16 %v1078, %v1077
        %v1082 = vpack.c.b16 %v1080, %v1079
        %1085 = vst [vmem:[#allocation2 + $0x70] sm:$0xff] %v1081
        %1086 = vst [vmem:[#allocation2 + $0x78] sm:$0xff] %v1082
        %1087 = vrot.lane.b32.xlu0 %v859, 111
        %v1088 = vpop.permute.xlu0 %1087
        %1089 = vrot.lane.b32.xlu0 %v861, 111
        %v1090 = vpop.permute.xlu0 %1089
        %1091 = vrot.lane.b32.xlu0 %v860, 111
        %v1092 = vpop.permute.xlu0 %1091
        %1093 = vrot.lane.b32.xlu0 %v862, 111
        %v1094 = vpop.permute.xlu0 %1093
        %v1095 = vsel %vm646, %v1088, %v1092
        %v1096 = vsel %vm646, %v1090, %v1094
        %v1097 = vsel %vm646, %v1092, %v1088
        %v1098 = vsel %vm646, %v1094, %v1090
        %v1099 = vsel %vm661, %v1095, 0.0
        %v1100 = vsel %vm662, %v1097, 0.0
        %v1101 = vsel %vm661, %v1096, 0.0
        %v1102 = vsel %vm662, %v1098, 0.0
        %v1103 = vpack.c.bf16 %v1101, %v1099
        %v1104 = vpack.c.bf16 %v1102, %v1100
        %v1107 = vunpack.c.l.b16 %v1103
        %v1108 = vunpack.c.l.b16 %v1104
        %v1109 = vunpack.c.h.b16 %v1103
        %v1110 = vunpack.c.h.b16 %v1104
        %v1111 = vpack.c.b16 %v1108, %v1107
        %v1112 = vpack.c.b16 %v1110, %v1109
        %1115 = vst [vmem:[#allocation2 + $0x80] sm:$0xff] %v1111
        %1116 = vst [vmem:[#allocation2 + $0x88] sm:$0xff] %v1112
        %v1117 = vld [vmem:[#allocation2] sm:$0xff]
        %v1118 = vld [vmem:[#allocation2 + $0x8] sm:$0xff]
        %v1119 = vld [vmem:[#allocation2 + $0x10] sm:$0xff]
        %v1120 = vld [vmem:[#allocation2 + $0x18] sm:$0xff]
        %v1121 = vld [vmem:[#allocation2 + $0x20] sm:$0xff]
        %v1122 = vld [vmem:[#allocation2 + $0x28] sm:$0xff]
        %v1123 = vld [vmem:[#allocation2 + $0x30] sm:$0xff]
        %v1124 = vld [vmem:[#allocation2 + $0x38] sm:$0xff]
        %v1125 = vld [vmem:[#allocation2 + $0x40] sm:$0xff]
        %v1126 = vld [vmem:[#allocation2 + $0x48] sm:$0xff]
        %v1127 = vld [vmem:[#allocation2 + $0x50] sm:$0xff]
        %v1128 = vld [vmem:[#allocation2 + $0x58] sm:$0xff]
        %v1129 = vld [vmem:[#allocation2 + $0x60] sm:$0xff]
        %v1130 = vld [vmem:[#allocation2 + $0x68] sm:$0xff]
        %v1131 = vld [vmem:[#allocation2 + $0x70] sm:$0xff]
        %v1132 = vld [vmem:[#allocation2 + $0x78] sm:$0xff]
        %v1133 = vld [vmem:[#allocation2 + $0x80] sm:$0xff]
        %v1134 = vld [vmem:[#allocation2 + $0x88] sm:$0xff]
        %v1135 = vld [vmem:[%s4] sm:$0xff]
        %v1136 = vld [vmem:[%s4 + $0x8] sm:$0xff]
        %v1137 = vld [vmem:[%s5] sm:$0xff]
        %v1138 = vld [vmem:[%s5 + $0x8] sm:$0xff]
        %1140 = vset.pattern.permute.xlu0 0
        %1141 = vperm.xlu0 %1140, %v1137
        %v1142 = vpop.permute.xlu0 %1141
        %1145 = vset.pattern.permute.xlu0 0
        %1146 = vperm.xlu0 %1145, %v1138
        %v1147 = vpop.permute.xlu0 %1146
        %v1151 = vunpack.c.l.b16 %v1135
        %v1152 = vunpack.c.h.b16 %v1135
        %v1153 = vunpack.c.l.b16 %v1136
        %v1154 = vunpack.c.h.b16 %v1136
        %v1155 = vpack.c.b16 %v1153, %v1151
        %v1156 = vpack.c.b16 %v1154, %v1152
        %v1176 = vunpack.c.l.b16 %v1117
        %v1177 = vunpack.c.h.b16 %v1117
        %v1178 = vunpack.c.l.b16 %v1118
        %v1179 = vunpack.c.h.b16 %v1118
        %v1180 = vunpack.c.l.b16 %v1119
        %v1181 = vunpack.c.h.b16 %v1119
        %v1182 = vunpack.c.l.b16 %v1120
        %v1183 = vunpack.c.h.b16 %v1120
        %v1184 = vunpack.c.l.b16 %v1121
        %v1185 = vunpack.c.h.b16 %v1121
        %v1186 = vunpack.c.l.b16 %v1122
        %v1187 = vunpack.c.h.b16 %v1122
        %v1188 = vunpack.c.l.b16 %v1123
        %v1189 = vunpack.c.h.b16 %v1123
        %v1190 = vunpack.c.l.b16 %v1124
        %v1191 = vunpack.c.h.b16 %v1124
        %v1192 = vunpack.c.l.b16 %v1125
        %v1193 = vunpack.c.h.b16 %v1125
        %v1194 = vunpack.c.l.b16 %v1126
        %v1195 = vunpack.c.h.b16 %v1126
        %v1196 = vunpack.c.l.b16 %v1127
        %v1197 = vunpack.c.h.b16 %v1127
        %v1198 = vunpack.c.l.b16 %v1128
        %v1199 = vunpack.c.h.b16 %v1128
        %v1200 = vunpack.c.l.b16 %v1129
        %v1201 = vunpack.c.h.b16 %v1129
        %v1202 = vunpack.c.l.b16 %v1130
        %v1203 = vunpack.c.h.b16 %v1130
        %v1204 = vunpack.c.l.b16 %v1131
        %v1205 = vunpack.c.h.b16 %v1131
        %v1206 = vunpack.c.l.b16 %v1132
        %v1207 = vunpack.c.h.b16 %v1132
        %v1208 = vunpack.c.l.b16 %v1133
        %v1209 = vunpack.c.h.b16 %v1133
        %v1210 = vunpack.c.l.b16 %v1134
        %v1211 = vunpack.c.h.b16 %v1134
        %v1212 = vpack.c.b16 %v1178, %v1176
        %v1213 = vpack.c.b16 %v1179, %v1177
        %v1214 = vpack.c.b16 %v1182, %v1180
        %v1215 = vpack.c.b16 %v1183, %v1181
        %v1216 = vpack.c.b16 %v1186, %v1184
        %v1217 = vpack.c.b16 %v1187, %v1185
        %v1218 = vpack.c.b16 %v1190, %v1188
        %v1219 = vpack.c.b16 %v1191, %v1189
        %v1220 = vpack.c.b16 %v1194, %v1192
        %v1221 = vpack.c.b16 %v1195, %v1193
        %v1222 = vpack.c.b16 %v1198, %v1196
        %v1223 = vpack.c.b16 %v1199, %v1197
        %v1224 = vpack.c.b16 %v1202, %v1200
        %v1225 = vpack.c.b16 %v1203, %v1201
        %v1226 = vpack.c.b16 %v1206, %v1204
        %v1227 = vpack.c.b16 %v1207, %v1205
        %v1228 = vpack.c.b16 %v1210, %v1208
        %v1229 = vpack.c.b16 %v1211, %v1209
        %v1249 = vsel %vm812, %v1156, 0
        %1251 = vmatprep.subr.bf16.mxu0 %v1227
        %1252 = vmatpush1.bf16.msra.mxu0 %v1226
        %1253 = vmatprep.subr.bf16.mxu0 %v1225
        %1254 = vmatpush1.bf16.msra.mxu0 %v1224
        %1255 = vmatprep.subr.bf16.mxu0 %v1223
        %1256 = vmatpush1.bf16.msra.mxu0 %v1222
        %1257 = vmatprep.subr.bf16.mxu0 %v1221
        %1258 = vmatpush1.bf16.msra.mxu0 %v1220
        %1259 = vmatprep.subr.bf16.mxu0 %v1219
        %1260 = vmatpush1.bf16.msra.mxu0 %v1218
        %1261 = vmatprep.subr.bf16.mxu0 %v1217
        %1262 = vmatpush1.bf16.msra.mxu0 %v1216
        %1263 = vmatprep.subr.bf16.mxu0 %v1215
        %1264 = vmatpush1.bf16.msra.mxu0 %v1214
        %1265 = vmatprep.subr.bf16.mxu0 %v1213
        %1266 = vmatpush1.bf16.msra.mxu0 %v1212
        %1267 = vmatprep.subr.bf16.mxu0 0
        %1268 = vmatpush2.bf16.msra.mxu0 0
        %1269 = vmatprep.subr.bf16.mxu0 0
        %1270 = vmatpush2.bf16.msra.mxu0 0
        %1271 = vmatprep.subr.bf16.mxu0 0
        %1272 = vmatpush2.bf16.msra.mxu0 0
        %1273 = vmatprep.subr.bf16.mxu0 0
        %1274 = vmatpush2.bf16.msra.mxu0 0
        %1275 = vmatprep.subr.bf16.mxu0 0
        %1276 = vmatpush2.bf16.msra.mxu0 0
        %1277 = vmatprep.subr.bf16.mxu0 0
        %1278 = vmatpush2.bf16.msra.mxu0 0
        %1279 = vmatprep.subr.bf16.mxu0 0
        %1280 = vmatpush2.bf16.msra.mxu0 0
        %1281 = vmatprep.subr.bf16.mxu0 %v1229
        %1282 = vmatpush2.bf16.msra.mxu0 %v1228
        %1283 = vmatprep.mubr.bf16.mxu0 %v1249
        %1284 = vmatmul.mubr.bf16.gmra.mxu0 %v1155
        %v1285 = vpop.f32.mrf.mxu0
        %v1286 = vadd.f32 %v1142, %v1285
        %v1287 = vpop.f32.mrf.mxu0
        %v1288 = vadd.f32 %v1142, %v1287
        %v1289 = vpop.f32.mrf.mxu0
        %v1290 = vadd.f32 %v1147, %v1289
        %v1291 = vpop.f32.mrf.mxu0
        %v1292 = vadd.f32 %v1147, %v1291
        %1293 = vdwg.mxu0
        %v1294 = vadd.f32 %v1286, %v321
        %v1295 = vadd.f32 %v1288, %v322
        %v1296 = vadd.f32 %v1290, %v323
        %v1297 = vadd.f32 %v1292, %v324
        %v1298 = vmax.f32 %v1294, 0.0
        %v1299 = vmax.f32 %v1295, 0.0
        %v1300 = vmax.f32 %v1296, 0.0
        %v1301 = vmax.f32 %v1297, 0.0
        %1302 = vst [vmem:[%s307] sm:$0xff] %v1298
        %1303 = vst [vmem:[%s307 + $0x8] sm:$0xff] %v1299
        %1304 = vst [vmem:[%s307 + $0x10] sm:$0xff] %v1300
        %1305 = vst [vmem:[%s307 + $0x18] sm:$0xff] %v1301
        %s1306 = sand.u32 %s170, 1
        %s1307 = scalar_lea.sflag [#allocation5], %s1306
        %s1308 = sand.u32 %s170, 1
        %s1309 = smul.addr %s1308, 32
        %s1310 = scalar_lea.vmem [#allocation8], %s1309
        // Predicated region
        $region53: #{tpu_custom_call.1} parent=43 // pred_check
          %p1311 = pneg %p180
        $region54: #{tpu_custom_call.1} parent=43 // pred_check_branch
          %1313 = sbr.rel (%p1311) target = $region56
        $region55: #{tpu_custom_call.1} parent=43 // pred_region
          %s1314 = smul.u32 2, %s26
          %s1316 = ssub.s32 512, 512
          %1317 = vsyncadd %s1307, %s1316
          %s1318 = smul.addr %s1314, 128
          %s1319 = scalar_lea.hbm %s6, %s1318
          %s1320 = sshll.u32 %s1310, 4
          %s1321 = int_to_ptr.vmem [resolvable:$true] %s1320
          %1326 = dma.vmem_to_hbm [thread:$0]  %s1321, 512, %s1319, %s1307, 256, 512, 16
        $region56: #{tpu_custom_call.1} parent=43 // pred_fallthru
          _
      $region44: #{tpu_custom_call.1} parent=5 // pred_fallthru
        _
      %p1327 = scmp.le.s32.totalorder 2, %s21
      // Predicated region
      $region57: #{tpu_custom_call.1} parent=5 // pred_check
        %p1328 = pneg %p1327
      $region58: #{tpu_custom_call.1} parent=5 // pred_check_branch
        %1330 = sbr.rel (%p1328) target = $region60
      $region59: #{tpu_custom_call.1} parent=5 // pred_region
        %s1331 = ssub.s32 %s21, 2
        // Predicated region
        $region61: #{tpu_custom_call.1} parent=59 // pred_check
          %p1332 = pneg %p186
        $region62: #{tpu_custom_call.1} parent=59 // pred_check_branch
          %1334 = sbr.rel (%p1332) target = $region64
        $region63: #{tpu_custom_call.1} parent=59 // pred_region
          %s1335 = sand.u32 %s171, 1
          %s1336 = scalar_lea.sflag [#allocation5], %s1335
          %s1337 = sand.u32 %s171, 1
          %s1338 = smul.addr %s1337, 32
          %s1339 = scalar_lea.vmem [#allocation8], %s1338
          %1340 = dma.done %s1336, 512
        $region64: #{tpu_custom_call.1} parent=59 // pred_fallthru
          _
      $region60: #{tpu_custom_call.1} parent=5 // pred_fallthru
        _
    $region6: #{tpu_custom_call.1} parent=1 // loop_footer
      %s25 = sadd.s32 1, %s21
    $region7: #{tpu_custom_call.1} parent=1 // loop_footer_branch
      %20 = sbr.rel target = $region3
    $region8: #{tpu_custom_call.1} parent=1 // loop_exit
      _
    %1341 = vsyncpa [#allocation4], 1
    %s1342 = scalar_lea.sflag [#allocation4], 1
    %1343 = vsyncpa %s1342, 1
    %1344 = vsyncpa [#allocation7], 1
    %s1345 = scalar_lea.sflag [#allocation7], 1
    %1346 = vsyncpa %s1345, 1
    %1347 = vsyncpa [#allocation5], 1
    %s1348 = scalar_lea.sflag [#allocation5], 1
    %1349 = vsyncpa %s1348, 1

</llo_original>
